<compile_context>
chip_gen: v7x
topology: tpu7x:2x2x1
jax: 0.10.0
libtpu: 0.0.40
codegen_flags: <defaults>
</compile_context>

<pallas_src>
import math

import jax
import jax.numpy as jnp
from jax import lax
from jax.experimental import pallas as pl
from jax.experimental.pallas import tpu as pltpu

# ---- small, forward-consistent synthetic sizes -------------------------------
N_PAD = 128        # object axis padded to a full 128-lane vreg (lane-dense I/O)
FEAT = 32          # object feature dim: softmax(attr_logits) ++ label_scores
HID = 32           # taxonomy hidden dim (hidden_dims[i])
N_CEPT = 16        # number of attribute concepts in the synthetic taxonomy
K_PAD = 128        # concept axis padded to 128 lanes (== N_PAD for slab packing)
TAU = 1.0 / math.sqrt(HID)   # scaled-dot-product similarity temperature
B_TILE = 8         # images per grid step (review #1); raise toward VMEM budget at scale

# slab row indices of the packed output (8, B, N_PAD)
ROW_MASK1, ROW_SEL1, ROW_UNQ1, ROW_MASK2, ROW_SEL2, ROW_UNQ2, ROW_SCORES, ROW_PAD = range(8)
N_ROWS = 8


def _masked_softmax(x, valid):
    """Row softmax over lanes restricted to `valid` lanes (padded lanes -> 0).

    Exact division with a denom guard: safe for n_obj == 0 padding rows and no
    approx-reciprocal error compounding (correctness-review items)."""
    xm = jnp.where(valid, x, jnp.float32(-1e30))
    m = jnp.max(xm, axis=-1, keepdims=True)
    e = jnp.where(valid, jnp.exp(xm - m), 0.0)
    denom = jnp.sum(e, axis=-1, keepdims=True)
    return e / jnp.maximum(denom, jnp.float32(1e-30))


def _program_kernel(nobj_ref, wts_ref, feat_ref, const_ref, out_ref):
    """Fused fixed program (scene -> select -> unique -> relate_s -> unique -> query)
    for B_TILE images per grid step.  Everything lives in (image-on-sublane,
    object-on-lane) (B_TILE, 128) vreg rows.

    nobj_ref  : (B_TILE, N_PAD) int32  per-image object counts, replicated over lanes
    wts_ref   : (3,) f32 SMEM  [1.4*sigmoid(w_sel), 1.4*sigmoid(w_rel), w_query]
    feat_ref  : (B_TILE, FEAT, N_PAD) f32  feature-major padded object features
    const_ref : (4*FEAT, K_PAD) f32 constant table:
                rows [0:F)   TAU * (w_attr  @ c_sel) broadcast over lanes
                rows [F:2F)  TAU * (w_rel_s @ c_rel) broadcast over lanes
                rows [2F:3F) TAU * (w_rel_o @ c_rel) broadcast over lanes
                rows [3F:4F) TAU * (w_attr @ attr_concepts^T), zero-padded to K_PAD
    out_ref   : (8, B_TILE, N_PAD) packed result slab (quantity-major)
    """
    b_tile = feat_ref.shape[0]

    feat = feat_ref[...]                                             # (B_TILE, F, N_PAD)
    nobj = nobj_ref[...]                                             # (B_TILE, N_PAD)
    obj_idx = lax.broadcasted_iota(jnp.int32, (b_tile, N_PAD), 1)
    valid = obj_idx < nobj                                           # (B_TILE, N_PAD)
    fvalid = valid.astype(jnp.float32)

    # constant table slices (sublane-aligned, lane-dense)
    c_sel = const_ref[0 * FEAT:1 * FEAT, :]                          # (F, N_PAD)
    c_s1 = const_ref[1 * FEAT:2 * FEAT, :]
    c_s2 = const_ref[2 * FEAT:3 * FEAT, :]
    m_query = const_ref[3 * FEAT:4 * FEAT, :]                        # (F, K_PAD)

    w0 = wts_ref[0]   # 1.4*sigmoid(weight) of select  (merge_fn), host-precomputed
    w1 = wts_ref[1]   # 1.4*sigmoid(weight) of relate_s (merge_fn)
    w2 = wts_ref[2]   # output_fn weight of query

    # ---- per-object concept similarities (W @ concept folded host-side) -------
    # mask1[b,n] = TAU * (feat[b,:,n] . (w_attr @ c_sel))   etc.  Pure VPU mul +
    # sublane reduce -- no MXU under-fill, no 96-wide masked layouts.
    mask1 = jnp.sum(feat * c_sel[None], axis=1) * fvalid             # (B_TILE, N_PAD)
    s1 = jnp.sum(feat * c_s1[None], axis=1) * fvalid                 # rel_s scores (TAU in)
    s2 = jnp.sum(feat * c_s2[None], axis=1) * fvalid                 # rel_o scores (TAU in)

    # ---- select(scene, attr, concept): merge_fn with selected == 0 ------------
    sel1 = w0 * mask1
    sel1_u = _masked_softmax(sel1, valid)                            # unique()

    # ---- relate_s(scene, unique(sel1), relconcept) -----------------------------
    # m[i,j] = TAU*(s1[i]+s2[j]) off-diagonal, -10 on the diagonal (self mask);
    # mask2[i] = sum_j m[i,j]*sel1_u[j] via the rank-1 structure (no NxN tensor).
    sum_sel = jnp.sum(sel1_u, axis=-1, keepdims=True)                # (B_TILE, 1)
    dot_s2 = jnp.sum(s2 * sel1_u, axis=-1, keepdims=True)            # (B_TILE, 1)
    mask2 = (s1 * sum_sel + dot_s2 - sel1_u * (s1 + s2 + 10.0)) * fvalid
    sel2 = w1 * mask2                                                # merge_fn, sel==0
    sel2_u = _masked_softmax(sel2, valid)                            # unique()

    # ---- query(unique(sel2), output_attr) --------------------------------------
    # attr_emb = (sel2_u @ feat) @ w_attr; scores = attr_emb @ concepts^T * TAU * w2,
    # with (w_attr @ concepts^T) folded into m_query on the host.
    pooled = jnp.sum(feat * sel2_u[:, None, :], axis=-1)             # (B_TILE, F)
    scores = jnp.dot(pooled, m_query,
                     preferred_element_type=jnp.float32) * w2        # (B_TILE, K_PAD)

    # quantity-major slab: each row is a dense, unmasked (B_TILE, 128) store
    out_ref[ROW_MASK1] = mask1
    out_ref[ROW_SEL1] = sel1
    out_ref[ROW_UNQ1] = sel1_u
    out_ref[ROW_MASK2] = mask2
    out_ref[ROW_SEL2] = sel2
    out_ref[ROW_UNQ2] = sel2_u
    out_ref[ROW_SCORES] = scores
    out_ref[ROW_PAD] = jnp.zeros_like(mask1)


def _run_fused_program(nobj_rep, weights_eff, features_fm, const_tab, *, b_tile=B_TILE):
    batch = features_fm.shape[0]
    n_blk = -(-batch // b_tile)
    b_pad = n_blk * b_tile
    if b_pad != batch:
        # pad with zero-object images (safe: guarded softmax denominator)
        features_fm = jnp.pad(features_fm, ((0, b_pad - batch), (0, 0), (0, 0)))
        nobj_rep = jnp.pad(nobj_rep, ((0, b_pad - batch), (0, 0)))

    out = pl.pallas_call(
        _program_kernel,
        out_shape=jax.ShapeDtypeStruct((N_ROWS, b_pad, N_PAD), jnp.float32),
        grid=(n_blk,),
        in_specs=[
            pl.BlockSpec((b_tile, N_PAD), lambda i: (i, 0)),             # object counts
            pl.BlockSpec(memory_space=pltpu.MemorySpace.SMEM),           # scalar weights
            pl.BlockSpec((b_tile, FEAT, N_PAD), lambda i: (i, 0, 0)),    # features
            pl.BlockSpec((4 * FEAT, K_PAD), lambda i: (0, 0)),           # fused constants
        ],
        out_specs=pl.BlockSpec((N_ROWS, b_tile, N_PAD), lambda i: (0, i, 0)),
        compiler_params=pltpu.CompilerParams(
            # images shard across TCs on v7x (>= 2 grid steps at demo sizes)
            dimension_semantics=("parallel",),
            # per-step double-buffered footprint ~0.4 MiB at B_TILE=8; this limit
            # leaves room to raise B_TILE into the hundreds on v7x (64 MiB VMEM)
            # and roughly 2x that on v5e/v6e (128 MiB physical).
            vmem_limit_bytes=32 * 1024 * 1024),
    )(nobj_rep, weights_eff, features_fm, const_tab)
    return out[:, :batch, :]


run_fused_program = jax.jit(_run_fused_program, static_argnames=("b_tile",))


# ------------------------------------------------------------------------------
# minimal DifferentiableReasoning wrapper
# ------------------------------------------------------------------------------
class DifferentiableReasoningPallas:
    """Deterministic synthetic taxonomy + fused Pallas executor for a fixed program."""

    def __init__(self, key, sel_concept=3, rel_concept=5):
        ks = jax.random.split(key, 6)
        self.w_attr = jax.random.normal(ks[0], (FEAT, HID), jnp.float32) * 0.1
        self.w_rel_s = jax.random.normal(ks[1], (FEAT, HID), jnp.float32) * 0.1
        self.w_rel_o = jax.random.normal(ks[2], (FEAT, HID), jnp.float32) * 0.1
        self.attr_concepts = jax.random.normal(ks[3], (N_CEPT, HID), jnp.float32) * 0.1
        self.rel_concepts = jax.random.normal(ks[4], (N_CEPT, HID), jnp.float32) * 0.1
        # TODO(synk): Weight_Predictor (bi-LSTM over tokenized programs + GloVe .npy
        # embeddings) is host/data-dependent; replaced by fixed deterministic weights.
        self.op_weights = jax.random.normal(ks[5], (8,), jnp.float32) * 0.5
        self.sel_concept = sel_concept
        self.rel_concept = rel_concept

        # ---- fused-kernel constant table (built once per model) -----------------
        # (feat @ W) @ c == feat @ (W @ c): fold the taxonomy projection into one
        # FEAT-vector per program concept and a (FEAT, K) query table; TAU folded in.
        v_sel = self.w_attr @ self.attr_concepts[sel_concept]            # (FEAT,)
        v_s1 = self.w_rel_s @ self.rel_concepts[rel_concept]
        v_s2 = self.w_rel_o @ self.rel_concepts[rel_concept]
        m_query = self.w_attr @ self.attr_concepts.T                     # (FEAT, N_CEPT)

        c = jnp.zeros((4 * FEAT, K_PAD), jnp.float32)
        c = c.at[0 * FEAT:1 * FEAT, :].set(
            jnp.broadcast_to((TAU * v_sel)[:, None], (FEAT, K_PAD)))
        c = c.at[1 * FEAT:2 * FEAT, :].set(
            jnp.broadcast_to((TAU * v_s1)[:, None], (FEAT, K_PAD)))
        c = c.at[2 * FEAT:3 * FEAT, :].set(
            jnp.broadcast_to((TAU * v_s2)[:, None], (FEAT, K_PAD)))
        c = c.at[3 * FEAT:4 * FEAT, :N_CEPT].set(TAU * m_query)
        self.const_tab = c

        # merge_fn / output_fn scalar weights; sigmoid done once on the host
        self.weights_eff = jnp.array(
            [1.4 * jax.nn.sigmoid(self.op_weights[0]),
             1.4 * jax.nn.sigmoid(self.op_weights[1]),
             self.op_weights[2]], jnp.float32)

    def run_programs(self, features_fm, num_objects):
        """Runs the fixed demo program (scene -> select -> relate_s -> query) for the
        whole batch, B_TILE images per fused grid step.  `features_fm` is the
        feature-major padded slab (B, FEAT, N_PAD); `num_objects` is (B,) int32.
        Returns the (8, B, N_PAD) quantity-major result slab.
        TODO(synk): the real module interprets arbitrary program sequences with
        Python control flow / exception fallback; that interpreter stays host-side."""
        nobj_rep = jnp.broadcast_to(
            num_objects.astype(jnp.int32)[:, None], (num_objects.shape[0], N_PAD))
        return run_fused_program(nobj_rep, self.weights_eff, features_fm,
                                 self.const_tab)


# ------------------------------------------------------------------------------
# pure-JAX reference for one (unpadded) image -- used only for a one-time check
# ------------------------------------------------------------------------------
def ref_program(feats, model):
    c_sel = model.attr_concepts[model.sel_concept]
    c_rel = model.rel_concepts[model.rel_concept]
    w0, w1, w2 = model.weights_eff
    emb = feats @ model.w_attr
    mask1 = (emb @ c_sel)[None, :] * TAU
    sel1 = w0 * mask1
    sel1_u = jax.nn.softmax(sel1, axis=-1)
    e1 = feats @ model.w_rel_s
    e2 = feats @ model.w_rel_o
    m = ((e1 @ c_rel)[:, None] + (e2 @ c_rel)[None, :]) * TAU
    eye = jnp.eye(feats.shape[0], dtype=m.dtype)
    m = m * (1 - eye) + (-10.0) * eye                       # do_apply_self_mask
    mask2 = (m * sel1_u[0][None, :]).sum(axis=1)[None, :]   # relate_s reduction
    sel2 = w1 * mask2
    sel2_u = jax.nn.softmax(sel2, axis=-1)
    attr_emb = sel2_u @ emb
    scores = (attr_emb @ model.attr_concepts.T) * TAU * w2  # output_fn
    return mask1, sel1, sel1_u, mask2, sel2, sel2_u, scores


if __name__ == "__main__":
    key = jax.random.PRNGKey(0)
    k_attr, k_lab, k_model = jax.random.split(key, 3)

    # 16 images -> 2 parallel grid steps of B_TILE=8 (both v7x TCs busy)
    num_objects = [8, 6, 5, 8, 7, 4, 8, 6] * 2               # ragged per-image counts
    batch = len(num_objects)
    total = sum(num_objects)
    n_attr = 12
    attr_logits = jax.random.normal(k_attr, (total, n_attr), jnp.float32)
    label_scores = jax.random.normal(k_lab, (total, FEAT - n_attr), jnp.float32)
    # sym_feat = softmax(attr_logits) ++ label_scores, as in the torch forward
    sym_feat = jnp.concatenate(
        [jax.nn.softmax(attr_logits, axis=-1), label_scores], axis=-1)   # (total, FEAT)

    # one-time host packing: flat object list -> feature-major (B, FEAT, N_PAD) slab
    feats_fm = jnp.zeros((batch, FEAT, N_PAD), jnp.float32)
    cur = 0
    for b, n in enumerate(num_objects):
        feats_fm = feats_fm.at[b, :, :n].set(sym_feat[cur:cur + n].T)
        cur += n
    nobj = jnp.asarray(num_objects, jnp.int32)

    model = DifferentiableReasoningPallas(k_model)
    out = model.run_programs(feats_fm, nobj)     # (8, B, N_PAD) packed result slab
    out = jax.block_until_ready(out)

    # one-time correctness check vs pure-JAX reference (outside the hot path)
    cur = 0
    for b, n in enumerate(num_objects):
        refs = ref_program(sym_feat[cur:cur + n], model)
        cur += n
        got_rows = (out[ROW_MASK1, b, :n], out[ROW_SEL1, b, :n], out[ROW_UNQ1, b, :n],
                    out[ROW_MASK2, b, :n], out[ROW_SEL2, b, :n], out[ROW_UNQ2, b, :n],
                    out[ROW_SCORES, b, :N_CEPT])
        for got, want in zip(got_rows, refs):
            assert jnp.allclose(got, want.reshape(-1), atol=2e-3, rtol=2e-3), \
                "kernel mismatch"

    print("KERNEL_OK")
</pallas_src>

<mosaic_0001>
module attributes {stable_mosaic.version = 11 : i64} {
  func.func @_program_kernel(%arg0: i32, %arg1: memref<8x128xi32, #tpu.memory_space<vmem>>, %arg2: memref<3xf32, #tpu.memory_space<smem>>, %arg3: memref<8x32x128xf32, #tpu.memory_space<vmem>>, %arg4: memref<128x128xf32, #tpu.memory_space<vmem>>, %arg5: memref<8x8x128xf32, #tpu.memory_space<vmem>>) attributes {dimension_semantics = [#tpu.dimension_semantics<parallel>], iteration_bounds = array<i64: 2>, scalar_prefetch = 0 : i64, scratch_operands = 0 : i64, tpu.core_type = #tpu.core_type<tc>, window_params = [{transform_indices = @transform_0, window_bounds = array<i64: 8, 128>}, {transform_indices = @transform_1, window_bounds = array<i64: 3>}, {transform_indices = @transform_2, window_bounds = array<i64: 8, 32, 128>}, {pipeline_mode = #tpu.pipeline_mode<synchronous>, transform_indices = @transform_3, window_bounds = array<i64: 128, 128>}, {transform_indices = @transform_4, window_bounds = array<i64: 8, 8, 128>}]} {
    %c0 = arith.constant 0 : index
    %c0_0 = arith.constant 0 : index
    %c0_1 = arith.constant 0 : index
    %0 = vector.load %arg3[%c0, %c0_0, %c0_1] : memref<8x32x128xf32, #tpu.memory_space<vmem>>, vector<8x32x128xf32>
    %c0_2 = arith.constant 0 : index
    %c0_3 = arith.constant 0 : index
    %1 = vector.load %arg1[%c0_2, %c0_3] : memref<8x128xi32, #tpu.memory_space<vmem>>, vector<8x128xi32>
    %2 = tpu.iota {dimensions = array<i32: 1>} : vector<8x128xi32>
    %3 = arith.cmpi slt, %2, %1 : vector<8x128xi32>
    %4 = arith.extui %3 : vector<8x128xi1> to vector<8x128xi32>
    %5 = arith.sitofp %4 : vector<8x128xi32> to vector<8x128xf32>
    %c0_4 = arith.constant 0 : index
    %c0_5 = arith.constant 0 : index
    %6 = vector.load %arg4[%c0_4, %c0_5] : memref<128x128xf32, #tpu.memory_space<vmem>>, vector<32x128xf32>
    %c32 = arith.constant 32 : index
    %c0_6 = arith.constant 0 : index
    %7 = vector.load %arg4[%c32, %c0_6] : memref<128x128xf32, #tpu.memory_space<vmem>>, vector<32x128xf32>
    %c64 = arith.constant 64 : index
    %c0_7 = arith.constant 0 : index
    %8 = vector.load %arg4[%c64, %c0_7] : memref<128x128xf32, #tpu.memory_space<vmem>>, vector<32x128xf32>
    %c96 = arith.constant 96 : index
    %c0_8 = arith.constant 0 : index
    %9 = vector.load %arg4[%c96, %c0_8] : memref<128x128xf32, #tpu.memory_space<vmem>>, vector<32x128xf32>
    %c0_9 = arith.constant 0 : index
    %10 = memref.load %arg2[%c0_9] : memref<3xf32, #tpu.memory_space<smem>>
    %c1 = arith.constant 1 : index
    %11 = memref.load %arg2[%c1] : memref<3xf32, #tpu.memory_space<smem>>
    %c2 = arith.constant 2 : index
    %12 = memref.load %arg2[%c2] : memref<3xf32, #tpu.memory_space<smem>>
    %13 = vector.shape_cast %6 : vector<32x128xf32> to vector<1x32x128xf32>
    %14 = vector.broadcast %13 : vector<1x32x128xf32> to vector<8x32x128xf32>
    %15 = arith.mulf %0, %14 : vector<8x32x128xf32>
    %cst = arith.constant dense<0.000000e+00> : vector<8x128xf32>
    %16 = vector.multi_reduction <add>, %15, %cst [1] : vector<8x32x128xf32> to vector<8x128xf32>
    %17 = arith.mulf %16, %5 : vector<8x128xf32>
    %18 = vector.shape_cast %7 : vector<32x128xf32> to vector<1x32x128xf32>
    %19 = vector.broadcast %18 : vector<1x32x128xf32> to vector<8x32x128xf32>
    %20 = arith.mulf %0, %19 : vector<8x32x128xf32>
    %cst_10 = arith.constant dense<0.000000e+00> : vector<8x128xf32>
    %21 = vector.multi_reduction <add>, %20, %cst_10 [1] : vector<8x32x128xf32> to vector<8x128xf32>
    %22 = arith.mulf %21, %5 : vector<8x128xf32>
    %23 = vector.shape_cast %8 : vector<32x128xf32> to vector<1x32x128xf32>
    %24 = vector.broadcast %23 : vector<1x32x128xf32> to vector<8x32x128xf32>
    %25 = arith.mulf %0, %24 : vector<8x32x128xf32>
    %cst_11 = arith.constant dense<0.000000e+00> : vector<8x128xf32>
    %26 = vector.multi_reduction <add>, %25, %cst_11 [1] : vector<8x32x128xf32> to vector<8x128xf32>
    %27 = arith.mulf %26, %5 : vector<8x128xf32>
    %28 = vector.broadcast %10 : f32 to vector<8x128xf32>
    %29 = arith.mulf %28, %17 : vector<8x128xf32>
    %cst_12 = arith.constant -1.000000e+30 : f32
    %30 = vector.broadcast %cst_12 : f32 to vector<8x128xf32>
    %31 = arith.select %3, %29, %30 : vector<8x128xi1>, vector<8x128xf32>
    %cst_13 = arith.constant dense<0xFF800000> : vector<8xf32>
    %32 = vector.multi_reduction <maximumf>, %31, %cst_13 [1] : vector<8x128xf32> to vector<8xf32>
    %33 = vector.shape_cast %32 : vector<8xf32> to vector<8x1xf32>
    %34 = vector.broadcast %33 : vector<8x1xf32> to vector<8x128xf32>
    %35 = arith.subf %31, %34 : vector<8x128xf32>
    %36 = math.exp %35 : vector<8x128xf32>
    %cst_14 = arith.constant 0.000000e+00 : f32
    %37 = vector.broadcast %cst_14 : f32 to vector<8x128xf32>
    %38 = arith.select %3, %36, %37 : vector<8x128xi1>, vector<8x128xf32>
    %cst_15 = arith.constant dense<0.000000e+00> : vector<8xf32>
    %39 = vector.multi_reduction <add>, %38, %cst_15 [1] : vector<8x128xf32> to vector<8xf32>
    %40 = vector.shape_cast %39 : vector<8xf32> to vector<8x1xf32>
    %cst_16 = arith.constant 1.000000e-30 : f32
    %41 = vector.broadcast %cst_16 : f32 to vector<8x1xf32>
    %42 = arith.maximumf %40, %41 : vector<8x1xf32>
    %43 = vector.broadcast %42 : vector<8x1xf32> to vector<8x128xf32>
    %44 = arith.divf %38, %43 : vector<8x128xf32>
    %cst_17 = arith.constant dense<0.000000e+00> : vector<8xf32>
    %45 = vector.multi_reduction <add>, %44, %cst_17 [1] : vector<8x128xf32> to vector<8xf32>
    %46 = vector.shape_cast %45 : vector<8xf32> to vector<8x1xf32>
    %47 = arith.mulf %27, %44 : vector<8x128xf32>
    %cst_18 = arith.constant dense<0.000000e+00> : vector<8xf32>
    %48 = vector.multi_reduction <add>, %47, %cst_18 [1] : vector<8x128xf32> to vector<8xf32>
    %49 = vector.shape_cast %48 : vector<8xf32> to vector<8x1xf32>
    %50 = vector.broadcast %46 : vector<8x1xf32> to vector<8x128xf32>
    %51 = arith.mulf %22, %50 : vector<8x128xf32>
    %52 = vector.broadcast %49 : vector<8x1xf32> to vector<8x128xf32>
    %53 = arith.addf %51, %52 : vector<8x128xf32>
    %54 = arith.addf %22, %27 : vector<8x128xf32>
    %cst_19 = arith.constant 1.000000e+01 : f32
    %55 = vector.broadcast %cst_19 : f32 to vector<8x128xf32>
    %56 = arith.addf %54, %55 : vector<8x128xf32>
    %57 = arith.mulf %44, %56 : vector<8x128xf32>
    %58 = arith.subf %53, %57 : vector<8x128xf32>
    %59 = arith.mulf %58, %5 : vector<8x128xf32>
    %60 = vector.broadcast %11 : f32 to vector<8x128xf32>
    %61 = arith.mulf %60, %59 : vector<8x128xf32>
    %cst_20 = arith.constant -1.000000e+30 : f32
    %62 = vector.broadcast %cst_20 : f32 to vector<8x128xf32>
    %63 = arith.select %3, %61, %62 : vector<8x128xi1>, vector<8x128xf32>
    %cst_21 = arith.constant dense<0xFF800000> : vector<8xf32>
    %64 = vector.multi_reduction <maximumf>, %63, %cst_21 [1] : vector<8x128xf32> to vector<8xf32>
    %65 = vector.shape_cast %64 : vector<8xf32> to vector<8x1xf32>
    %66 = vector.broadcast %65 : vector<8x1xf32> to vector<8x128xf32>
    %67 = arith.subf %63, %66 : vector<8x128xf32>
    %68 = math.exp %67 : vector<8x128xf32>
    %cst_22 = arith.constant 0.000000e+00 : f32
    %69 = vector.broadcast %cst_22 : f32 to vector<8x128xf32>
    %70 = arith.select %3, %68, %69 : vector<8x128xi1>, vector<8x128xf32>
    %cst_23 = arith.constant dense<0.000000e+00> : vector<8xf32>
    %71 = vector.multi_reduction <add>, %70, %cst_23 [1] : vector<8x128xf32> to vector<8xf32>
    %72 = vector.shape_cast %71 : vector<8xf32> to vector<8x1xf32>
    %cst_24 = arith.constant 1.000000e-30 : f32
    %73 = vector.broadcast %cst_24 : f32 to vector<8x1xf32>
    %74 = arith.maximumf %72, %73 : vector<8x1xf32>
    %75 = vector.broadcast %74 : vector<8x1xf32> to vector<8x128xf32>
    %76 = arith.divf %70, %75 : vector<8x128xf32>
    %77 = vector.shape_cast %76 : vector<8x128xf32> to vector<8x1x128xf32>
    %78 = vector.broadcast %77 : vector<8x1x128xf32> to vector<8x32x128xf32>
    %79 = arith.mulf %0, %78 : vector<8x32x128xf32>
    %cst_25 = arith.constant dense<0.000000e+00> : vector<8x32xf32>
    %80 = vector.multi_reduction <add>, %79, %cst_25 [2] : vector<8x32x128xf32> to vector<8x32xf32>
    %cst_26 = arith.constant dense<0.000000e+00> : vector<8x128xf32>
    %81 = tpu.matmul %80, %9, %cst_26 {dimension_numbers = #tpu.dot_dimension_numbers<[1], [0], [0], [1], [0, 0, 1, 1], [], []>} : vector<8x32xf32>, vector<32x128xf32>, vector<8x128xf32> -> vector<8x128xf32>
    %82 = vector.broadcast %12 : f32 to vector<8x128xf32>
    %83 = arith.mulf %81, %82 : vector<8x128xf32>
    %c0_27 = arith.constant 0 : index
    %c0_28 = arith.constant 0 : index
    %c0_29 = arith.constant 0 : index
    %84 = vector.load %arg5[%c0_27, %c0_28, %c0_29] : memref<8x8x128xf32, #tpu.memory_space<vmem>>, vector<1x8x128xf32>
    %85 = vector.shape_cast %84 : vector<1x8x128xf32> to vector<8x128xf32>
    %86 = vector.shape_cast %17 : vector<8x128xf32> to vector<1x8x128xf32>
    tpu.vector_store %arg5[%c0_27, %c0_28, %c0_29], %86 {strides = array<i32>} : memref<8x8x128xf32, #tpu.memory_space<vmem>>, vector<1x8x128xf32>,
    %c1_30 = arith.constant 1 : index
    %c0_31 = arith.constant 0 : index
    %c0_32 = arith.constant 0 : index
    %87 = vector.load %arg5[%c1_30, %c0_31, %c0_32] : memref<8x8x128xf32, #tpu.memory_space<vmem>>, vector<1x8x128xf32>
    %88 = vector.shape_cast %87 : vector<1x8x128xf32> to vector<8x128xf32>
    %89 = vector.shape_cast %29 : vector<8x128xf32> to vector<1x8x128xf32>
    tpu.vector_store %arg5[%c1_30, %c0_31, %c0_32], %89 {strides = array<i32>} : memref<8x8x128xf32, #tpu.memory_space<vmem>>, vector<1x8x128xf32>,
    %c2_33 = arith.constant 2 : index
    %c0_34 = arith.constant 0 : index
    %c0_35 = arith.constant 0 : index
    %90 = vector.load %arg5[%c2_33, %c0_34, %c0_35] : memref<8x8x128xf32, #tpu.memory_space<vmem>>, vector<1x8x128xf32>
    %91 = vector.shape_cast %90 : vector<1x8x128xf32> to vector<8x128xf32>
    %92 = vector.shape_cast %44 : vector<8x128xf32> to vector<1x8x128xf32>
    tpu.vector_store %arg5[%c2_33, %c0_34, %c0_35], %92 {strides = array<i32>} : memref<8x8x128xf32, #tpu.memory_space<vmem>>, vector<1x8x128xf32>,
    %c3 = arith.constant 3 : index
    %c0_36 = arith.constant 0 : index
    %c0_37 = arith.constant 0 : index
    %93 = vector.load %arg5[%c3, %c0_36, %c0_37] : memref<8x8x128xf32, #tpu.memory_space<vmem>>, vector<1x8x128xf32>
    %94 = vector.shape_cast %93 : vector<1x8x128xf32> to vector<8x128xf32>
    %95 = vector.shape_cast %59 : vector<8x128xf32> to vector<1x8x128xf32>
    tpu.vector_store %arg5[%c3, %c0_36, %c0_37], %95 {strides = array<i32>} : memref<8x8x128xf32, #tpu.memory_space<vmem>>, vector<1x8x128xf32>,
    %c4 = arith.constant 4 : index
    %c0_38 = arith.constant 0 : index
    %c0_39 = arith.constant 0 : index
    %96 = vector.load %arg5[%c4, %c0_38, %c0_39] : memref<8x8x128xf32, #tpu.memory_space<vmem>>, vector<1x8x128xf32>
    %97 = vector.shape_cast %96 : vector<1x8x128xf32> to vector<8x128xf32>
    %98 = vector.shape_cast %61 : vector<8x128xf32> to vector<1x8x128xf32>
    tpu.vector_store %arg5[%c4, %c0_38, %c0_39], %98 {strides = array<i32>} : memref<8x8x128xf32, #tpu.memory_space<vmem>>, vector<1x8x128xf32>,
    %c5 = arith.constant 5 : index
    %c0_40 = arith.constant 0 : index
    %c0_41 = arith.constant 0 : index
    %99 = vector.load %arg5[%c5, %c0_40, %c0_41] : memref<8x8x128xf32, #tpu.memory_space<vmem>>, vector<1x8x128xf32>
    %100 = vector.shape_cast %99 : vector<1x8x128xf32> to vector<8x128xf32>
    %101 = vector.shape_cast %76 : vector<8x128xf32> to vector<1x8x128xf32>
    tpu.vector_store %arg5[%c5, %c0_40, %c0_41], %101 {strides = array<i32>} : memref<8x8x128xf32, #tpu.memory_space<vmem>>, vector<1x8x128xf32>,
    %c6 = arith.constant 6 : index
    %c0_42 = arith.constant 0 : index
    %c0_43 = arith.constant 0 : index
    %102 = vector.load %arg5[%c6, %c0_42, %c0_43] : memref<8x8x128xf32, #tpu.memory_space<vmem>>, vector<1x8x128xf32>
    %103 = vector.shape_cast %102 : vector<1x8x128xf32> to vector<8x128xf32>
    %104 = vector.shape_cast %83 : vector<8x128xf32> to vector<1x8x128xf32>
    tpu.vector_store %arg5[%c6, %c0_42, %c0_43], %104 {strides = array<i32>} : memref<8x8x128xf32, #tpu.memory_space<vmem>>, vector<1x8x128xf32>,
    %cst_44 = arith.constant 0.000000e+00 : f32
    %105 = vector.broadcast %cst_44 : f32 to vector<8x128xf32>
    %c7 = arith.constant 7 : index
    %c0_45 = arith.constant 0 : index
    %c0_46 = arith.constant 0 : index
    %106 = vector.load %arg5[%c7, %c0_45, %c0_46] : memref<8x8x128xf32, #tpu.memory_space<vmem>>, vector<1x8x128xf32>
    %107 = vector.shape_cast %106 : vector<1x8x128xf32> to vector<8x128xf32>
    %108 = vector.shape_cast %105 : vector<8x128xf32> to vector<1x8x128xf32>
    tpu.vector_store %arg5[%c7, %c0_45, %c0_46], %108 {strides = array<i32>} : memref<8x8x128xf32, #tpu.memory_space<vmem>>, vector<1x8x128xf32>,
    return
  }
  func.func @transform_0(%arg0: i32) -> (i32, i32) {
    %c0_i32 = arith.constant 0 : i32
    %c0_i32_0 = arith.constant 0 : i32
    return %arg0, %c0_i32 : i32, i32
  }
  func.func @transform_1(%arg0: i32) -> i32 {
    %c0_i32 = arith.constant 0 : i32
    %c0_i32_0 = arith.constant 0 : i32
    return %c0_i32 : i32
  }
  func.func @transform_2(%arg0: i32) -> (i32, i32, i32) {
    %c0_i32 = arith.constant 0 : i32
    %c0_i32_0 = arith.constant 0 : i32
    %c0_i32_1 = arith.constant 0 : i32
    return %arg0, %c0_i32, %c0_i32_0 : i32, i32, i32
  }
  func.func @transform_3(%arg0: i32) -> (i32, i32) {
    %c0_i32 = arith.constant 0 : i32
    %c0_i32_0 = arith.constant 0 : i32
    %c0_i32_1 = arith.constant 0 : i32
    return %c0_i32, %c0_i32_0 : i32, i32
  }
  func.func @transform_4(%arg0: i32) -> (i32, i32, i32) {
    %c0_i32 = arith.constant 0 : i32
    %c0_i32_0 = arith.constant 0 : i32
    %c0_i32_1 = arith.constant 0 : i32
    return %c0_i32, %arg0, %c0_i32_0 : i32, i32, i32
  }
}

</mosaic_0001>

<llo_original>
// kernel: _run_fused_program.1
$region0: #{_run_fused_program.1}
  #allocation0 [shape = 'u32[]', space=smem, size = 0x4, offset = 0x4, fixed_abs, tag = 'smem constant byte address 0x4 - core index']
  #allocation1 [shape = 'u32[144,128]{1,0:T(1,128)}', space=vmem, size = 0x12000, scoped, tag = 'internal scratch']
  %s0 = inlined_call_operand.hbm [shape: s32[16,128], index: 0, kind: input, shape index: {}]
  %s1 = inlined_call_operand.vmem [shape: f32[3], index: 1, kind: input, shape index: {}]
  %s2 = inlined_call_operand.hbm [shape: f32[16,32,128], index: 2, kind: input, shape index: {}]
  %s3 = inlined_call_operand.hbm [shape: f32[128,128], index: 3, kind: input, shape index: {}]
  %s4 = inlined_call_operand.hbm [shape: f32[8,16,128], index: 4, kind: output, shape index: {}]
  %s5 = sld [smem:[#allocation0]]
  $region65: #{_run_fused_program.1} parent=0
    _
  %s7 = ssub.s32 1, %s5
  %s8 = scalar_select 0, %s7, %s5
  $region1: #{_run_fused_program.1} parent=0
    #allocation2 [shape = 'u8[8192]{0}', space=vmem, size = 0x2000, scoped, tag = 'input window, operand 0']
    #allocation3 [shape = 's32[2]{0}', space=sflag, size = 0x8, scoped, tag = 'scoped memory for _run_fused_program.1']
    #allocation4 [shape = 's32[2]{0}', space=sflag, size = 0x8, scoped, tag = 'scoped memory for _run_fused_program.1']
    #allocation5 [shape = 's32[2]{0}', space=sflag, size = 0x8, scoped, tag = 'scoped memory for _run_fused_program.1']
    #allocation6 [shape = 'u8[512]{0}', space=smem, size = 0x200, scoped, tag = 'input window, operand 1, single buffered']
    #allocation7 [shape = 'u8[262144]{0}', space=vmem, size = 0x40000, scoped, tag = 'input window, operand 2']
    #allocation8 [shape = 's32[2]{0}', space=sflag, size = 0x8, scoped, tag = 'scoped memory for _run_fused_program.1']
    #allocation9 [shape = 'u8[65536]{0}', space=vmem, size = 0x10000, scoped, tag = 'input window, operand 3, single buffered']
    #allocation10 [shape = 'u8[65536]{0}', space=vmem, size = 0x10000, scoped, tag = 'output window, operand 0']
    %9 = vsyncpa [#allocation3], 0
    %s10 = scalar_lea.sflag [#allocation3], 1
    %11 = vsyncpa %s10, 0
    %12 = vsyncpa [#allocation5], 0
    %13 = vsyncpa [#allocation8], 0
    %s14 = scalar_lea.sflag [#allocation8], 1
    %15 = vsyncpa %s14, 0
    %16 = vsyncpa [#allocation4], 0
    %s17 = scalar_lea.sflag [#allocation4], 1
    %18 = vsyncpa %s17, 0
    loop: start=0, step=1, limit=4
    $region2: #{_run_fused_program.1} parent=1 // loop_pre_header
      _
    $region3: #{_run_fused_program.1} parent=1 // loop_header
      %s20 = sphi 0, %s24
      %p21 = scmp.ge.s32.totalorder %s20, 4
      %s30 = sphi 0, %s32
      %s33 = sphi 0, %s30
      %s34 = sphi 0, %s33
      %s50 = sphi 0, %s34
      %s54 = sphi 0, %s54
      %s56 = sphi 0, %s54
      %s57 = sphi 0, %s56
      %s71 = sphi 0, %s57
      %s77 = sphi 0, %s79
      %s80 = sphi 0, %s77
      %s81 = sphi 0, %s80
      %s97 = sphi 0, %s81
      %s101 = sphi 0, %s101
      %s103 = sphi 0, %s101
      %s104 = sphi 0, %s103
      %s118 = sphi 0, %s104
      %s124 = sphi 0, %s126
      %s127 = sphi 0, %s124
      %s128 = sphi 0, %s127
      %s144 = sphi 0, %s128
    $region4: #{_run_fused_program.1} parent=1 // loop_header_branch
      %23 = sbr.rel (%p21) target = $region8
    $region5: #{_run_fused_program.1} parent=1 // loop_body
      %s25 = ssub.s32 %s20, 1
      %s26 = ssub.s32 %s20, 2
      %s27 = sadd.s32 %s20, 1
      %s28 = ssub.s32 %s20, %s27
      %p29 = scmp.eq.s32.totalorder %s28, 0
      %s31 = sadd.s32 %s30, 1
      %s32 = scalar_select %p29, %s30, %s31
      %p35 = pneg %p29
      %p36 = scmp.eq.s32.totalorder %s20, 1
      %p37 = por %p35, %p36
      %p38 = scmp.ne.s32.totalorder %s30, %s33
      %p39 = scmp.eq.s32.totalorder %s20, 0
      %p40 = por %p38, %p39
      %p41 = scmp.ne.s32.totalorder %s30, %s33
      %p42 = scmp.eq.s32.totalorder %s25, 1
      %p43 = por %p41, %p42
      %p44 = scmp.ne.s32.totalorder %s33, %s34
      %p45 = scmp.eq.s32.totalorder %s25, 0
      %p46 = por %p44, %p45
      %p47 = scmp.ne.s32.totalorder %s33, %s34
      %p48 = scmp.eq.s32.totalorder %s26, 1
      %p49 = por %p47, %p48
      %p51 = scmp.ne.s32.totalorder %s34, %s50
      %p52 = scmp.eq.s32.totalorder %s26, 0
      %p53 = por %p51, %p52
      %s55 = sadd.s32 %s54, 1
      %p58 = scmp.eq.s32.totalorder %s20, 1
      %p59 = scmp.ne.s32.totalorder %s54, %s56
      %p60 = scmp.eq.s32.totalorder %s20, 0
      %p61 = por %p59, %p60
      %p62 = scmp.ne.s32.totalorder %s54, %s56
      %p63 = scmp.eq.s32.totalorder %s25, 1
      %p64 = por %p62, %p63
      %p65 = scmp.ne.s32.totalorder %s56, %s57
      %p66 = scmp.eq.s32.totalorder %s25, 0
      %p67 = por %p65, %p66
      %p68 = scmp.ne.s32.totalorder %s56, %s57
      %p69 = scmp.eq.s32.totalorder %s26, 1
      %p70 = por %p68, %p69
      %p72 = scmp.ne.s32.totalorder %s57, %s71
      %p73 = scmp.eq.s32.totalorder %s26, 0
      %p74 = por %p72, %p73
      %s75 = ssub.s32 %s20, %s27
      %p76 = scmp.eq.s32.totalorder %s75, 0
      %s78 = sadd.s32 %s77, 1
      %s79 = scalar_select %p76, %s77, %s78
      %p82 = pneg %p76
      %p83 = scmp.eq.s32.totalorder %s20, 1
      %p84 = por %p82, %p83
      %p85 = scmp.ne.s32.totalorder %s77, %s80
      %p86 = scmp.eq.s32.totalorder %s20, 0
      %p87 = por %p85, %p86
      %p88 = scmp.ne.s32.totalorder %s77, %s80
      %p89 = scmp.eq.s32.totalorder %s25, 1
      %p90 = por %p88, %p89
      %p91 = scmp.ne.s32.totalorder %s80, %s81
      %p92 = scmp.eq.s32.totalorder %s25, 0
      %p93 = por %p91, %p92
      %p94 = scmp.ne.s32.totalorder %s80, %s81
      %p95 = scmp.eq.s32.totalorder %s26, 1
      %p96 = por %p94, %p95
      %p98 = scmp.ne.s32.totalorder %s81, %s97
      %p99 = scmp.eq.s32.totalorder %s26, 0
      %p100 = por %p98, %p99
      %s102 = sadd.s32 %s101, 1
      %p105 = scmp.eq.s32.totalorder %s20, 1
      %p106 = scmp.ne.s32.totalorder %s101, %s103
      %p107 = scmp.eq.s32.totalorder %s20, 0
      %p108 = por %p106, %p107
      %p109 = scmp.ne.s32.totalorder %s101, %s103
      %p110 = scmp.eq.s32.totalorder %s25, 1
      %p111 = por %p109, %p110
      %p112 = scmp.ne.s32.totalorder %s103, %s104
      %p113 = scmp.eq.s32.totalorder %s25, 0
      %p114 = por %p112, %p113
      %p115 = scmp.ne.s32.totalorder %s103, %s104
      %p116 = scmp.eq.s32.totalorder %s26, 1
      %p117 = por %p115, %p116
      %p119 = scmp.ne.s32.totalorder %s104, %s118
      %p120 = scmp.eq.s32.totalorder %s26, 0
      %p121 = por %p119, %p120
      %s122 = ssub.s32 %s20, %s27
      %p123 = scmp.eq.s32.totalorder %s122, 0
      %s125 = sadd.s32 %s124, 1
      %s126 = scalar_select %p123, %s124, %s125
      %p129 = pneg %p123
      %p130 = scmp.eq.s32.totalorder %s20, 1
      %p131 = por %p129, %p130
      %p132 = scmp.ne.s32.totalorder %s124, %s127
      %p133 = scmp.eq.s32.totalorder %s20, 0
      %p134 = por %p132, %p133
      %p135 = scmp.ne.s32.totalorder %s124, %s127
      %p136 = scmp.eq.s32.totalorder %s25, 1
      %p137 = por %p135, %p136
      %p138 = scmp.ne.s32.totalorder %s127, %s128
      %p139 = scmp.eq.s32.totalorder %s25, 0
      %p140 = por %p138, %p139
      %p141 = scmp.ne.s32.totalorder %s127, %s128
      %p142 = scmp.eq.s32.totalorder %s26, 1
      %p143 = por %p141, %p142
      %p145 = scmp.ne.s32.totalorder %s128, %s144
      %p146 = scmp.eq.s32.totalorder %s26, 0
      %p147 = por %p145, %p146
      %p148 = scmp.le.s32.totalorder 1, %s20
      %p149 = scmp.lt.s32.totalorder %s20, 3
      %p150 = pnand %p148, %p149
      %p151 = pneg %p150
      // Predicated region
      $region9: #{_run_fused_program.1} parent=5 // pred_check
        _
      $region10: #{_run_fused_program.1} parent=5 // pred_check_branch
        %153 = sbr.rel (%p150) target = $region12
      $region11: #{_run_fused_program.1} parent=5 // pred_region
        %s154 = ssub.s32 %s20, 1
        // Predicated region
        $region13: #{_run_fused_program.1} parent=11 // pred_check
          %p155 = pneg %p67
        $region14: #{_run_fused_program.1} parent=11 // pred_check_branch
          %157 = sbr.rel (%p155) target = $region16
        $region15: #{_run_fused_program.1} parent=11 // pred_region
          %s159 = ssub.s32 16, 16
          %160 = vsyncadd [#allocation5], %s159
          %s162 = sshll.u32 %s1, 4
          %s163 = int_to_ptr.vmem [resolvable:$true] %s162
          %165 = dma.vmem_to_smem %s163, 16, [#allocation6], [#allocation5]
        $region16: #{_run_fused_program.1} parent=11 // pred_fallthru
          _
        // Predicated region
        $region17: #{_run_fused_program.1} parent=11 // pred_check
          %p166 = pneg %p114
        $region18: #{_run_fused_program.1} parent=11 // pred_check_branch
          %168 = sbr.rel (%p166) target = $region20
        $region19: #{_run_fused_program.1} parent=11 // pred_region
          %s170 = ssub.s32 2048, 2048
          %171 = vsyncadd [#allocation8], %s170
          %s172 = sshll.u32 [#allocation9], 4
          %s173 = int_to_ptr.vmem [resolvable:$true] %s172
          %178 = dma.hbm_to_vmem [thread:$0]  %s3, 2048, %s173, [#allocation8], 128, 128, 8
        $region20: #{_run_fused_program.1} parent=11 // pred_fallthru
          _
      $region12: #{_run_fused_program.1} parent=5 // pred_fallthru
        _
      %p179 = scmp.lt.s32.totalorder %s20, 2
      // Predicated region
      $region21: #{_run_fused_program.1} parent=5 // pred_check
        %p180 = pneg %p179
      $region22: #{_run_fused_program.1} parent=5 // pred_check_branch
        %182 = sbr.rel (%p180) target = $region24
      $region23: #{_run_fused_program.1} parent=5 // pred_region
        // Predicated region
        $region25: #{_run_fused_program.1} parent=23 // pred_check
          %p183 = pneg %p40
        $region26: #{_run_fused_program.1} parent=23 // pred_check_branch
          %185 = sbr.rel (%p183) target = $region28
        $region27: #{_run_fused_program.1} parent=23 // pred_region
          %s186 = sand.u32 %s30, 1
          %s187 = scalar_lea.sflag [#allocation3], %s186
          %s188 = sand.u32 %s30, 1
          %s189 = smul.addr %s188, 8
          %s190 = scalar_lea.vmem [#allocation2], %s189
          %s192 = ssub.s32 128, 128
          %193 = vsyncadd %s187, %s192
          %s194 = smul.addr %s20, 128
          %s195 = scalar_lea.hbm %s0, %s194
          %s197 = sshll.u32 %s190, 4
          %s198 = int_to_ptr.vmem [resolvable:$true] %s197
          %200 = dma.hbm_to_vmem [thread:$0]  %s195, 128, %s198, %s187
        $region28: #{_run_fused_program.1} parent=23 // pred_fallthru
          _
        // Predicated region
        $region29: #{_run_fused_program.1} parent=23 // pred_check
          %p201 = pneg %p87
        $region30: #{_run_fused_program.1} parent=23 // pred_check_branch
          %203 = sbr.rel (%p201) target = $region32
        $region31: #{_run_fused_program.1} parent=23 // pred_region
          %s204 = sand.u32 %s20, 1
          %s205 = scalar_lea.sflag [#allocation8], %s204
          %s206 = sand.u32 %s77, 1
          %s207 = smul.addr %s206, 256
          %s208 = scalar_lea.vmem [#allocation7], %s207
          %s209 = smul.u32 8, %s20
          %s211 = ssub.s32 4096, 4096
          %212 = vsyncadd %s205, %s211
          %s213 = smul.addr %s209, 4
          %s214 = smul.addr %s213, 128
          %s215 = scalar_lea.hbm %s2, %s214
          %s216 = sshll.u32 %s208, 4
          %s217 = int_to_ptr.vmem [resolvable:$true] %s216
          %222 = dma.hbm_to_vmem [thread:$0]  %s215, 4096, %s217, %s205, 128, 128, 8
        $region32: #{_run_fused_program.1} parent=23 // pred_fallthru
          _
      $region24: #{_run_fused_program.1} parent=5 // pred_fallthru
        _
      %p223 = scmp.le.s32.totalorder 1, %s20
      %p224 = scmp.lt.s32.totalorder %s20, 3
      %p225 = pnand %p223, %p224
      %p226 = pneg %p225
      // Predicated region
      $region33: #{_run_fused_program.1} parent=5 // pred_check
        _
      $region34: #{_run_fused_program.1} parent=5 // pred_check_branch
        %228 = sbr.rel (%p225) target = $region36
      $region35: #{_run_fused_program.1} parent=5 // pred_region
        %s229 = ssub.s32 %s20, 1
        %s230 = sand.u32 %s33, 1
        %s231 = scalar_lea.sflag [#allocation3], %s230
        %s232 = sand.u32 %s33, 1
        %s233 = smul.addr %s232, 8
        %s234 = scalar_lea.vmem [#allocation2], %s233
        // Predicated region
        $region37: #{_run_fused_program.1} parent=35 // pred_check
          %p235 = pneg %p46
        $region38: #{_run_fused_program.1} parent=35 // pred_check_branch
          %237 = sbr.rel (%p235) target = $region40
        $region39: #{_run_fused_program.1} parent=35 // pred_region
          %238 = dma.done %s231, 128
        $region40: #{_run_fused_program.1} parent=35 // pred_fallthru
          _
        // Predicated region
        $region41: #{_run_fused_program.1} parent=35 // pred_check
          %p239 = pneg %p67
        $region42: #{_run_fused_program.1} parent=35 // pred_check_branch
          %241 = sbr.rel (%p239) target = $region44
        $region43: #{_run_fused_program.1} parent=35 // pred_region
          %242 = dma.done [#allocation5], 16
        $region44: #{_run_fused_program.1} parent=35 // pred_fallthru
          _
        %s243 = sand.u32 %s25, 1
        %s244 = scalar_lea.sflag [#allocation8], %s243
        %s245 = sand.u32 %s80, 1
        %s246 = smul.addr %s245, 256
        %s247 = scalar_lea.vmem [#allocation7], %s246
        // Predicated region
        $region45: #{_run_fused_program.1} parent=35 // pred_check
          %p248 = pneg %p93
        $region46: #{_run_fused_program.1} parent=35 // pred_check_branch
          %250 = sbr.rel (%p248) target = $region48
        $region47: #{_run_fused_program.1} parent=35 // pred_region
          %251 = dma.done %s244, 4096
        $region48: #{_run_fused_program.1} parent=35 // pred_fallthru
          _
        // Predicated region
        $region49: #{_run_fused_program.1} parent=35 // pred_check
          %p252 = pneg %p114
        $region50: #{_run_fused_program.1} parent=35 // pred_check_branch
          %254 = sbr.rel (%p252) target = $region52
        $region51: #{_run_fused_program.1} parent=35 // pred_region
          %255 = dma.done [#allocation8], 2048
        $region52: #{_run_fused_program.1} parent=35 // pred_fallthru
          _
        %256 = sfence
        %s257 = sand.u32 %s33, 1
        %s258 = scalar_lea.sflag [#allocation3], %s257
        %s259 = sand.u32 %s33, 1
        %s260 = smul.addr %s259, 8
        %s261 = scalar_lea.vmem [#allocation2], %s260
        %p262 = pneg %p46
        %p263 = pneg %p43
        %p264 = pneg %p67
        %p265 = pneg %p64
        %s266 = sand.u32 %s25, 1
        %s267 = scalar_lea.sflag [#allocation8], %s266
        %s268 = sand.u32 %s80, 1
        %s269 = smul.addr %s268, 256
        %s270 = scalar_lea.vmem [#allocation7], %s269
        %p271 = pneg %p93
        %p272 = pneg %p90
        %p273 = pneg %p114
        %p274 = pneg %p111
        %p275 = pneg %p140
        %p276 = pneg %p137
        %s277 = sand.u32 %s127, 1
        %s278 = scalar_lea.sflag [#allocation4], %s277
        %s279 = sand.u32 %s127, 1
        %s280 = smul.addr %s279, 64
        %s281 = scalar_lea.vmem [#allocation10], %s280
        %s282 = smul.u32 8, %s25
        %v283 = vld [vmem:[%s247] sm:$0xff]
        %v284 = vld [vmem:[%s247 + $0x8] sm:$0xff]
        %v285 = vld [vmem:[%s247 + $0x10] sm:$0xff]
        %v286 = vld [vmem:[%s247 + $0x18] sm:$0xff]
        %v287 = vld [vmem:[%s247 + $0x20] sm:$0xff]
        %v288 = vld [vmem:[%s247 + $0x28] sm:$0xff]
        %v289 = vld [vmem:[%s247 + $0x30] sm:$0xff]
        %v290 = vld [vmem:[%s247 + $0x38] sm:$0xff]
        %v291 = vld [vmem:[%s247 + $0x40] sm:$0xff]
        %v292 = vld [vmem:[%s247 + $0x48] sm:$0xff]
        %v293 = vld [vmem:[%s247 + $0x50] sm:$0xff]
        %v294 = vld [vmem:[%s247 + $0x58] sm:$0xff]
        %v295 = vld [vmem:[%s247 + $0x60] sm:$0xff]
        %v296 = vld [vmem:[%s247 + $0x68] sm:$0xff]
        %v297 = vld [vmem:[%s247 + $0x70] sm:$0xff]
        %v298 = vld [vmem:[%s247 + $0x78] sm:$0xff]
        %v299 = vld [vmem:[%s247 + $0x80] sm:$0xff]
        %v300 = vld [vmem:[%s247 + $0x88] sm:$0xff]
        %v301 = vld [vmem:[%s247 + $0x90] sm:$0xff]
        %v302 = vld [vmem:[%s247 + $0x98] sm:$0xff]
        %v303 = vld [vmem:[%s247 + $0xa0] sm:$0xff]
        %v304 = vld [vmem:[%s247 + $0xa8] sm:$0xff]
        %v305 = vld [vmem:[%s247 + $0xb0] sm:$0xff]
        %v306 = vld [vmem:[%s247 + $0xb8] sm:$0xff]
        %v307 = vld [vmem:[%s247 + $0xc0] sm:$0xff]
        %v308 = vld [vmem:[%s247 + $0xc8] sm:$0xff]
        %v309 = vld [vmem:[%s247 + $0xd0] sm:$0xff]
        %v310 = vld [vmem:[%s247 + $0xd8] sm:$0xff]
        %v311 = vld [vmem:[%s247 + $0xe0] sm:$0xff]
        %v312 = vld [vmem:[%s247 + $0xe8] sm:$0xff]
        %v313 = vld [vmem:[%s247 + $0xf0] sm:$0xff]
        %v314 = vld [vmem:[%s247 + $0xf8] sm:$0xff]
        %v315 = vld [vmem:[%s234] sm:$0xff]
        %v316 = vlaneseq
        %v317 = vand.u32 %v316, 127
        %vm318 = vcmp.lt.s32.totalorder %v317, %v315
        %v319 = vsel %vm318, 1, 0
        %v320 = vcvt.s32.f32 %v319
        %v321 = vld [vmem:[#allocation9] sm:$0xff]
        %v322 = vld [vmem:[#allocation9 + $0x8] sm:$0xff]
        %v323 = vld [vmem:[#allocation9 + $0x10] sm:$0xff]
        %v324 = vld [vmem:[#allocation9 + $0x18] sm:$0xff]
        %v325 = vld [vmem:[#allocation9 + $0x20] sm:$0xff]
        %v326 = vld [vmem:[#allocation9 + $0x28] sm:$0xff]
        %v327 = vld [vmem:[#allocation9 + $0x30] sm:$0xff]
        %v328 = vld [vmem:[#allocation9 + $0x38] sm:$0xff]
        %v329 = vld [vmem:[#allocation9 + $0x40] sm:$0xff]
        %v330 = vld [vmem:[#allocation9 + $0x48] sm:$0xff]
        %v331 = vld [vmem:[#allocation9 + $0x50] sm:$0xff]
        %v332 = vld [vmem:[#allocation9 + $0x58] sm:$0xff]
        %v333 = vld [vmem:[#allocation9 + $0x60] sm:$0xff]
        %v334 = vld [vmem:[#allocation9 + $0x68] sm:$0xff]
        %v335 = vld [vmem:[#allocation9 + $0x70] sm:$0xff]
        %v336 = vld [vmem:[#allocation9 + $0x78] sm:$0xff]
        %s337 = sld [smem:[#allocation6]]
        %s338 = sld [smem:[#allocation6 + $0x1]]
        %s339 = sld [smem:[#allocation6 + $0x2]]
        %v340 = vmul.f32 %v283, %v321
        %v341 = vmul.f32 %v284, %v322
        %v342 = vmul.f32 %v285, %v323
        %v343 = vmul.f32 %v286, %v324
        %v344 = vmul.f32 %v287, %v321
        %v345 = vmul.f32 %v288, %v322
        %v346 = vmul.f32 %v289, %v323
        %v347 = vmul.f32 %v290, %v324
        %v348 = vmul.f32 %v291, %v321
        %v349 = vmul.f32 %v292, %v322
        %v350 = vmul.f32 %v293, %v323
        %v351 = vmul.f32 %v294, %v324
        %v352 = vmul.f32 %v295, %v321
        %v353 = vmul.f32 %v296, %v322
        %v354 = vmul.f32 %v297, %v323
        %v355 = vmul.f32 %v298, %v324
        %v356 = vmul.f32 %v299, %v321
        %v357 = vmul.f32 %v300, %v322
        %v358 = vmul.f32 %v301, %v323
        %v359 = vmul.f32 %v302, %v324
        %v360 = vmul.f32 %v303, %v321
        %v361 = vmul.f32 %v304, %v322
        %v362 = vmul.f32 %v305, %v323
        %v363 = vmul.f32 %v306, %v324
        %v364 = vmul.f32 %v307, %v321
        %v365 = vmul.f32 %v308, %v322
        %v366 = vmul.f32 %v309, %v323
        %v367 = vmul.f32 %v310, %v324
        %v368 = vmul.f32 %v311, %v321
        %v369 = vmul.f32 %v312, %v322
        %v370 = vmul.f32 %v313, %v323
        %v371 = vmul.f32 %v314, %v324
        %v372 = vadd.f32 %v340, %v341
        %v373 = vadd.f32 %v372, %v342
        %v374 = vadd.f32 %v373, %v343
        %v375 = vrot.slane %v374, 4
        %v376 = vadd.f32 %v374, %v375
        %v377 = vrot.slane %v376, 2
        %v378 = vadd.f32 %v376, %v377
        %v379 = vrot.slane %v378, 1
        %v380 = vadd.f32 %v378, %v379
        %v381 = vadd.f32 %v344, %v345
        %v382 = vadd.f32 %v381, %v346
        %v383 = vadd.f32 %v382, %v347
        %v384 = vrot.slane %v383, 4
        %v385 = vadd.f32 %v383, %v384
        %v386 = vrot.slane %v385, 2
        %v387 = vadd.f32 %v385, %v386
        %v388 = vrot.slane %v387, 1
        %v389 = vadd.f32 %v387, %v388
        %v390 = vadd.f32 %v348, %v349
        %v391 = vadd.f32 %v390, %v350
        %v392 = vadd.f32 %v391, %v351
        %v393 = vrot.slane %v392, 4
        %v394 = vadd.f32 %v392, %v393
        %v395 = vrot.slane %v394, 2
        %v396 = vadd.f32 %v394, %v395
        %v397 = vrot.slane %v396, 1
        %v398 = vadd.f32 %v396, %v397
        %v399 = vadd.f32 %v352, %v353
        %v400 = vadd.f32 %v399, %v354
        %v401 = vadd.f32 %v400, %v355
        %v402 = vrot.slane %v401, 4
        %v403 = vadd.f32 %v401, %v402
        %v404 = vrot.slane %v403, 2
        %v405 = vadd.f32 %v403, %v404
        %v406 = vrot.slane %v405, 1
        %v407 = vadd.f32 %v405, %v406
        %v408 = vadd.f32 %v356, %v357
        %v409 = vadd.f32 %v408, %v358
        %v410 = vadd.f32 %v409, %v359
        %v411 = vrot.slane %v410, 4
        %v412 = vadd.f32 %v410, %v411
        %v413 = vrot.slane %v412, 2
        %v414 = vadd.f32 %v412, %v413
        %v415 = vrot.slane %v414, 1
        %v416 = vadd.f32 %v414, %v415
        %v417 = vadd.f32 %v360, %v361
        %v418 = vadd.f32 %v417, %v362
        %v419 = vadd.f32 %v418, %v363
        %v420 = vrot.slane %v419, 4
        %v421 = vadd.f32 %v419, %v420
        %v422 = vrot.slane %v421, 2
        %v423 = vadd.f32 %v421, %v422
        %v424 = vrot.slane %v423, 1
        %v425 = vadd.f32 %v423, %v424
        %v426 = vadd.f32 %v364, %v365
        %v427 = vadd.f32 %v426, %v366
        %v428 = vadd.f32 %v427, %v367
        %v429 = vrot.slane %v428, 4
        %v430 = vadd.f32 %v428, %v429
        %v431 = vrot.slane %v430, 2
        %v432 = vadd.f32 %v430, %v431
        %v433 = vrot.slane %v432, 1
        %v434 = vadd.f32 %v432, %v433
        %v435 = vadd.f32 %v368, %v369
        %v436 = vadd.f32 %v435, %v370
        %v437 = vadd.f32 %v436, %v371
        %v438 = vrot.slane %v437, 4
        %v439 = vadd.f32 %v437, %v438
        %v440 = vrot.slane %v439, 2
        %v441 = vadd.f32 %v439, %v440
        %v442 = vrot.slane %v441, 1
        %v443 = vadd.f32 %v441, %v442
        %v445 = vrot.slane %v320, 1
        %v446 = vrot.slane %v320, 2
        %v447 = vrot.slane %v320, 3
        %v448 = vrot.slane %v320, 4
        %v449 = vrot.slane %v320, 5
        %v450 = vrot.slane %v320, 6
        %v451 = vrot.slane %v320, 7
        %v460 = vmul.f32 %v380, %v320
        %v461 = vmul.f32 %v389, %v445
        %v462 = vmul.f32 %v398, %v446
        %v463 = vmul.f32 %v407, %v447
        %v464 = vmul.f32 %v416, %v448
        %v465 = vmul.f32 %v425, %v449
        %v466 = vmul.f32 %v434, %v450
        %v467 = vmul.f32 %v443, %v451
        %v468 = vmul.f32 %v283, %v325
        %v469 = vmul.f32 %v284, %v326
        %v470 = vmul.f32 %v285, %v327
        %v471 = vmul.f32 %v286, %v328
        %v472 = vmul.f32 %v287, %v325
        %v473 = vmul.f32 %v288, %v326
        %v474 = vmul.f32 %v289, %v327
        %v475 = vmul.f32 %v290, %v328
        %v476 = vmul.f32 %v291, %v325
        %v477 = vmul.f32 %v292, %v326
        %v478 = vmul.f32 %v293, %v327
        %v479 = vmul.f32 %v294, %v328
        %v480 = vmul.f32 %v295, %v325
        %v481 = vmul.f32 %v296, %v326
        %v482 = vmul.f32 %v297, %v327
        %v483 = vmul.f32 %v298, %v328
        %v484 = vmul.f32 %v299, %v325
        %v485 = vmul.f32 %v300, %v326
        %v486 = vmul.f32 %v301, %v327
        %v487 = vmul.f32 %v302, %v328
        %v488 = vmul.f32 %v303, %v325
        %v489 = vmul.f32 %v304, %v326
        %v490 = vmul.f32 %v305, %v327
        %v491 = vmul.f32 %v306, %v328
        %v492 = vmul.f32 %v307, %v325
        %v493 = vmul.f32 %v308, %v326
        %v494 = vmul.f32 %v309, %v327
        %v495 = vmul.f32 %v310, %v328
        %v496 = vmul.f32 %v311, %v325
        %v497 = vmul.f32 %v312, %v326
        %v498 = vmul.f32 %v313, %v327
        %v499 = vmul.f32 %v314, %v328
        %v500 = vadd.f32 %v468, %v469
        %v501 = vadd.f32 %v500, %v470
        %v502 = vadd.f32 %v501, %v471
        %v503 = vrot.slane %v502, 4
        %v504 = vadd.f32 %v502, %v503
        %v505 = vrot.slane %v504, 2
        %v506 = vadd.f32 %v504, %v505
        %v507 = vrot.slane %v506, 1
        %v508 = vadd.f32 %v506, %v507
        %v509 = vadd.f32 %v472, %v473
        %v510 = vadd.f32 %v509, %v474
        %v511 = vadd.f32 %v510, %v475
        %v512 = vrot.slane %v511, 4
        %v513 = vadd.f32 %v511, %v512
        %v514 = vrot.slane %v513, 2
        %v515 = vadd.f32 %v513, %v514
        %v516 = vrot.slane %v515, 1
        %v517 = vadd.f32 %v515, %v516
        %v518 = vadd.f32 %v476, %v477
        %v519 = vadd.f32 %v518, %v478
        %v520 = vadd.f32 %v519, %v479
        %v521 = vrot.slane %v520, 4
        %v522 = vadd.f32 %v520, %v521
        %v523 = vrot.slane %v522, 2
        %v524 = vadd.f32 %v522, %v523
        %v525 = vrot.slane %v524, 1
        %v526 = vadd.f32 %v524, %v525
        %v527 = vadd.f32 %v480, %v481
        %v528 = vadd.f32 %v527, %v482
        %v529 = vadd.f32 %v528, %v483
        %v530 = vrot.slane %v529, 4
        %v531 = vadd.f32 %v529, %v530
        %v532 = vrot.slane %v531, 2
        %v533 = vadd.f32 %v531, %v532
        %v534 = vrot.slane %v533, 1
        %v535 = vadd.f32 %v533, %v534
        %v536 = vadd.f32 %v484, %v485
        %v537 = vadd.f32 %v536, %v486
        %v538 = vadd.f32 %v537, %v487
        %v539 = vrot.slane %v538, 4
        %v540 = vadd.f32 %v538, %v539
        %v541 = vrot.slane %v540, 2
        %v542 = vadd.f32 %v540, %v541
        %v543 = vrot.slane %v542, 1
        %v544 = vadd.f32 %v542, %v543
        %v545 = vadd.f32 %v488, %v489
        %v546 = vadd.f32 %v545, %v490
        %v547 = vadd.f32 %v546, %v491
        %v548 = vrot.slane %v547, 4
        %v549 = vadd.f32 %v547, %v548
        %v550 = vrot.slane %v549, 2
        %v551 = vadd.f32 %v549, %v550
        %v552 = vrot.slane %v551, 1
        %v553 = vadd.f32 %v551, %v552
        %v554 = vadd.f32 %v492, %v493
        %v555 = vadd.f32 %v554, %v494
        %v556 = vadd.f32 %v555, %v495
        %v557 = vrot.slane %v556, 4
        %v558 = vadd.f32 %v556, %v557
        %v559 = vrot.slane %v558, 2
        %v560 = vadd.f32 %v558, %v559
        %v561 = vrot.slane %v560, 1
        %v562 = vadd.f32 %v560, %v561
        %v563 = vadd.f32 %v496, %v497
        %v564 = vadd.f32 %v563, %v498
        %v565 = vadd.f32 %v564, %v499
        %v566 = vrot.slane %v565, 4
        %v567 = vadd.f32 %v565, %v566
        %v568 = vrot.slane %v567, 2
        %v569 = vadd.f32 %v567, %v568
        %v570 = vrot.slane %v569, 1
        %v571 = vadd.f32 %v569, %v570
        %v572 = vmul.f32 %v508, %v320
        %v573 = vmul.f32 %v517, %v445
        %v574 = vmul.f32 %v526, %v446
        %v575 = vmul.f32 %v535, %v447
        %v576 = vmul.f32 %v544, %v448
        %v577 = vmul.f32 %v553, %v449
        %v578 = vmul.f32 %v562, %v450
        %v579 = vmul.f32 %v571, %v451
        %v580 = vmul.f32 %v283, %v329
        %v581 = vmul.f32 %v284, %v330
        %v582 = vmul.f32 %v285, %v331
        %v583 = vmul.f32 %v286, %v332
        %v584 = vmul.f32 %v287, %v329
        %v585 = vmul.f32 %v288, %v330
        %v586 = vmul.f32 %v289, %v331
        %v587 = vmul.f32 %v290, %v332
        %v588 = vmul.f32 %v291, %v329
        %v589 = vmul.f32 %v292, %v330
        %v590 = vmul.f32 %v293, %v331
        %v591 = vmul.f32 %v294, %v332
        %v592 = vmul.f32 %v295, %v329
        %v593 = vmul.f32 %v296, %v330
        %v594 = vmul.f32 %v297, %v331
        %v595 = vmul.f32 %v298, %v332
        %v596 = vmul.f32 %v299, %v329
        %v597 = vmul.f32 %v300, %v330
        %v598 = vmul.f32 %v301, %v331
        %v599 = vmul.f32 %v302, %v332
        %v600 = vmul.f32 %v303, %v329
        %v601 = vmul.f32 %v304, %v330
        %v602 = vmul.f32 %v305, %v331
        %v603 = vmul.f32 %v306, %v332
        %v604 = vmul.f32 %v307, %v329
        %v605 = vmul.f32 %v308, %v330
        %v606 = vmul.f32 %v309, %v331
        %v607 = vmul.f32 %v310, %v332
        %v608 = vmul.f32 %v311, %v329
        %v609 = vmul.f32 %v312, %v330
        %v610 = vmul.f32 %v313, %v331
        %v611 = vmul.f32 %v314, %v332
        %v612 = vadd.f32 %v580, %v581
        %v613 = vadd.f32 %v612, %v582
        %v614 = vadd.f32 %v613, %v583
        %v615 = vrot.slane %v614, 4
        %v616 = vadd.f32 %v614, %v615
        %v617 = vrot.slane %v616, 2
        %v618 = vadd.f32 %v616, %v617
        %v619 = vrot.slane %v618, 1
        %v620 = vadd.f32 %v618, %v619
        %v621 = vadd.f32 %v584, %v585
        %v622 = vadd.f32 %v621, %v586
        %v623 = vadd.f32 %v622, %v587
        %v624 = vrot.slane %v623, 4
        %v625 = vadd.f32 %v623, %v624
        %v626 = vrot.slane %v625, 2
        %v627 = vadd.f32 %v625, %v626
        %v628 = vrot.slane %v627, 1
        %v629 = vadd.f32 %v627, %v628
        %v630 = vadd.f32 %v588, %v589
        %v631 = vadd.f32 %v630, %v590
        %v632 = vadd.f32 %v631, %v591
        %v633 = vrot.slane %v632, 4
        %v634 = vadd.f32 %v632, %v633
        %v635 = vrot.slane %v634, 2
        %v636 = vadd.f32 %v634, %v635
        %v637 = vrot.slane %v636, 1
        %v638 = vadd.f32 %v636, %v637
        %v639 = vadd.f32 %v592, %v593
        %v640 = vadd.f32 %v639, %v594
        %v641 = vadd.f32 %v640, %v595
        %v642 = vrot.slane %v641, 4
        %v643 = vadd.f32 %v641, %v642
        %v644 = vrot.slane %v643, 2
        %v645 = vadd.f32 %v643, %v644
        %v646 = vrot.slane %v645, 1
        %v647 = vadd.f32 %v645, %v646
        %v648 = vadd.f32 %v596, %v597
        %v649 = vadd.f32 %v648, %v598
        %v650 = vadd.f32 %v649, %v599
        %v651 = vrot.slane %v650, 4
        %v652 = vadd.f32 %v650, %v651
        %v653 = vrot.slane %v652, 2
        %v654 = vadd.f32 %v652, %v653
        %v655 = vrot.slane %v654, 1
        %v656 = vadd.f32 %v654, %v655
        %v657 = vadd.f32 %v600, %v601
        %v658 = vadd.f32 %v657, %v602
        %v659 = vadd.f32 %v658, %v603
        %v660 = vrot.slane %v659, 4
        %v661 = vadd.f32 %v659, %v660
        %v662 = vrot.slane %v661, 2
        %v663 = vadd.f32 %v661, %v662
        %v664 = vrot.slane %v663, 1
        %v665 = vadd.f32 %v663, %v664
        %v666 = vadd.f32 %v604, %v605
        %v667 = vadd.f32 %v666, %v606
        %v668 = vadd.f32 %v667, %v607
        %v669 = vrot.slane %v668, 4
        %v670 = vadd.f32 %v668, %v669
        %v671 = vrot.slane %v670, 2
        %v672 = vadd.f32 %v670, %v671
        %v673 = vrot.slane %v672, 1
        %v674 = vadd.f32 %v672, %v673
        %v675 = vadd.f32 %v608, %v609
        %v676 = vadd.f32 %v675, %v610
        %v677 = vadd.f32 %v676, %v611
        %v678 = vrot.slane %v677, 4
        %v679 = vadd.f32 %v677, %v678
        %v680 = vrot.slane %v679, 2
        %v681 = vadd.f32 %v679, %v680
        %v682 = vrot.slane %v681, 1
        %v683 = vadd.f32 %v681, %v682
        %v684 = vmul.f32 %v620, %v320
        %v685 = vmul.f32 %v629, %v445
        %v686 = vmul.f32 %v638, %v446
        %v687 = vmul.f32 %v647, %v447
        %v688 = vmul.f32 %v656, %v448
        %v689 = vmul.f32 %v665, %v449
        %v690 = vmul.f32 %v674, %v450
        %v691 = vmul.f32 %v683, %v451
        %v692 = vstv %s337
        %v693 = vmul.f32 %v692, %v460
        %v694 = vmul.f32 %v692, %v461
        %v695 = vmul.f32 %v692, %v462
        %v696 = vmul.f32 %v692, %v463
        %v697 = vmul.f32 %v692, %v464
        %v698 = vmul.f32 %v692, %v465
        %v699 = vmul.f32 %v692, %v466
        %v700 = vmul.f32 %v692, %v467
        %v709 = vrot.slane %v694, 7
        %vm710 = vcmask 1041409
        %v711 = vsel %vm710, %v709, %v693
        %v712 = vrot.slane %v695, 6
        %vm713 = vcmask 1042434
        %v714 = vsel %vm713, %v712, %v711
        %v715 = vrot.slane %v696, 5
        %vm716 = vcmask 1043459
        %v717 = vsel %vm716, %v715, %v714
        %v718 = vrot.slane %v697, 4
        %vm719 = vcmask 1044484
        %v720 = vsel %vm719, %v718, %v717
        %v721 = vrot.slane %v698, 3
        %vm722 = vcmask 1045509
        %v723 = vsel %vm722, %v721, %v720
        %v724 = vrot.slane %v699, 2
        %vm725 = vcmask 1046534
        %v726 = vsel %vm725, %v724, %v723
        %v727 = vrot.slane %v700, 1
        %vm728 = vcmask 1047559
        %v729 = vsel %vm728, %v727, %v726
        %v731 = vsel %vm318, %v729, -1e+30
        %732 = vmax.xlane.f32.xlu0 %v731
        %v733 = vpop.xlane.xlu0 %732
        %v734 = vsub.f32 %v731, %v733
        %v735 = vmul.f32 %v734, 1.442695
        %v736 = vpow.pop %v735
        %v737 = vsel %vm318, %v736, 0.0
        %738 = vadd.xlane.f32.xlu0 %v737
        %v739 = vpop.xlane.xlu0 %738
        %v740 = vmax.f32 %v739, 1e-30
        %v741 = vrcp.pop %v740
        %v742 = vmul.f32 %v737, %v741
        %743 = vadd.xlane.f32.xlu0 %v742
        %v744 = vpop.xlane.xlu0 %743
        %v746 = vrot.slane %v742, 1
        %v747 = vrot.slane %v742, 2
        %v748 = vrot.slane %v742, 3
        %v749 = vrot.slane %v742, 4
        %v750 = vrot.slane %v742, 5
        %v751 = vrot.slane %v742, 6
        %v752 = vrot.slane %v742, 7
        %v761 = vmul.f32 %v684, %v742
        %v762 = vmul.f32 %v685, %v746
        %v763 = vmul.f32 %v686, %v747
        %v764 = vmul.f32 %v687, %v748
        %v765 = vmul.f32 %v688, %v749
        %v766 = vmul.f32 %v689, %v750
        %v767 = vmul.f32 %v690, %v751
        %v768 = vmul.f32 %v691, %v752
        %v777 = vrot.slane %v762, 7
        %v778 = vsel %vm710, %v777, %v761
        %v779 = vrot.slane %v763, 6
        %v780 = vsel %vm713, %v779, %v778
        %v781 = vrot.slane %v764, 5
        %v782 = vsel %vm716, %v781, %v780
        %v783 = vrot.slane %v765, 4
        %v784 = vsel %vm719, %v783, %v782
        %v785 = vrot.slane %v766, 3
        %v786 = vsel %vm722, %v785, %v784
        %v787 = vrot.slane %v767, 2
        %v788 = vsel %vm725, %v787, %v786
        %v789 = vrot.slane %v768, 1
        %v790 = vsel %vm728, %v789, %v788
        %792 = vadd.xlane.f32.xlu0 %v790
        %v793 = vpop.xlane.xlu0 %792
        %v795 = vrot.slane %v744, 1
        %v796 = vrot.slane %v744, 2
        %v797 = vrot.slane %v744, 3
        %v798 = vrot.slane %v744, 4
        %v799 = vrot.slane %v744, 5
        %v800 = vrot.slane %v744, 6
        %v801 = vrot.slane %v744, 7
        %v810 = vmul.f32 %v572, %v744
        %v811 = vmul.f32 %v573, %v795
        %v812 = vmul.f32 %v574, %v796
        %v813 = vmul.f32 %v575, %v797
        %v814 = vmul.f32 %v576, %v798
        %v815 = vmul.f32 %v577, %v799
        %v816 = vmul.f32 %v578, %v800
        %v817 = vmul.f32 %v579, %v801
        %v819 = vrot.slane %v793, 1
        %v820 = vrot.slane %v793, 2
        %v821 = vrot.slane %v793, 3
        %v822 = vrot.slane %v793, 4
        %v823 = vrot.slane %v793, 5
        %v824 = vrot.slane %v793, 6
        %v825 = vrot.slane %v793, 7
        %v834 = vadd.f32 %v810, %v793
        %v835 = vadd.f32 %v811, %v819
        %v836 = vadd.f32 %v812, %v820
        %v837 = vadd.f32 %v813, %v821
        %v838 = vadd.f32 %v814, %v822
        %v839 = vadd.f32 %v815, %v823
        %v840 = vadd.f32 %v816, %v824
        %v841 = vadd.f32 %v817, %v825
        %v842 = vadd.f32 %v572, %v684
        %v843 = vadd.f32 %v573, %v685
        %v844 = vadd.f32 %v574, %v686
        %v845 = vadd.f32 %v575, %v687
        %v846 = vadd.f32 %v576, %v688
        %v847 = vadd.f32 %v577, %v689
        %v848 = vadd.f32 %v578, %v690
        %v849 = vadd.f32 %v579, %v691
        %v850 = vadd.f32 %v842, 10.0
        %v851 = vadd.f32 %v843, 10.0
        %v852 = vadd.f32 %v844, 10.0
        %v853 = vadd.f32 %v845, 10.0
        %v854 = vadd.f32 %v846, 10.0
        %v855 = vadd.f32 %v847, 10.0
        %v856 = vadd.f32 %v848, 10.0
        %v857 = vadd.f32 %v849, 10.0
        %v866 = vrot.slane %v851, 7
        %v867 = vsel %vm710, %v866, %v850
        %v868 = vrot.slane %v852, 6
        %v869 = vsel %vm713, %v868, %v867
        %v870 = vrot.slane %v853, 5
        %v871 = vsel %vm716, %v870, %v869
        %v872 = vrot.slane %v854, 4
        %v873 = vsel %vm719, %v872, %v871
        %v874 = vrot.slane %v855, 3
        %v875 = vsel %vm722, %v874, %v873
        %v876 = vrot.slane %v856, 2
        %v877 = vsel %vm725, %v876, %v875
        %v878 = vrot.slane %v857, 1
        %v879 = vsel %vm728, %v878, %v877
        %v881 = vmul.f32 %v742, %v879
        %v883 = vrot.slane %v881, 1
        %v884 = vrot.slane %v881, 2
        %v885 = vrot.slane %v881, 3
        %v886 = vrot.slane %v881, 4
        %v887 = vrot.slane %v881, 5
        %v888 = vrot.slane %v881, 6
        %v889 = vrot.slane %v881, 7
        %v898 = vsub.f32 %v834, %v881
        %v899 = vsub.f32 %v835, %v883
        %v900 = vsub.f32 %v836, %v884
        %v901 = vsub.f32 %v837, %v885
        %v902 = vsub.f32 %v838, %v886
        %v903 = vsub.f32 %v839, %v887
        %v904 = vsub.f32 %v840, %v888
        %v905 = vsub.f32 %v841, %v889
        %v906 = vmul.f32 %v898, %v320
        %v907 = vmul.f32 %v899, %v445
        %v908 = vmul.f32 %v900, %v446
        %v909 = vmul.f32 %v901, %v447
        %v910 = vmul.f32 %v902, %v448
        %v911 = vmul.f32 %v903, %v449
        %v912 = vmul.f32 %v904, %v450
        %v913 = vmul.f32 %v905, %v451
        %v914 = vstv %s338
        %v915 = vmul.f32 %v914, %v906
        %v916 = vmul.f32 %v914, %v907
        %v917 = vmul.f32 %v914, %v908
        %v918 = vmul.f32 %v914, %v909
        %v919 = vmul.f32 %v914, %v910
        %v920 = vmul.f32 %v914, %v911
        %v921 = vmul.f32 %v914, %v912
        %v922 = vmul.f32 %v914, %v913
        %v931 = vrot.slane %v916, 7
        %v932 = vsel %vm710, %v931, %v915
        %v933 = vrot.slane %v917, 6
        %v934 = vsel %vm713, %v933, %v932
        %v935 = vrot.slane %v918, 5
        %v936 = vsel %vm716, %v935, %v934
        %v937 = vrot.slane %v919, 4
        %v938 = vsel %vm719, %v937, %v936
        %v939 = vrot.slane %v920, 3
        %v940 = vsel %vm722, %v939, %v938
        %v941 = vrot.slane %v921, 2
        %v942 = vsel %vm725, %v941, %v940
        %v943 = vrot.slane %v922, 1
        %v944 = vsel %vm728, %v943, %v942
        %v946 = vsel %vm318, %v944, -1e+30
        %947 = vmax.xlane.f32.xlu0 %v946
        %v948 = vpop.xlane.xlu0 %947
        %v949 = vsub.f32 %v946, %v948
        %v950 = vmul.f32 %v949, 1.442695
        %v951 = vpow.pop %v950
        %v952 = vsel %vm318, %v951, 0.0
        %953 = vadd.xlane.f32.xlu0 %v952
        %v954 = vpop.xlane.xlu0 %953
        %v955 = vmax.f32 %v954, 1e-30
        %v956 = vrcp.pop %v955
        %v957 = vmul.f32 %v952, %v956
        %v959 = vcombine.high %v957, %v957
        %v961 = vunpack.c.l.s4 1966171168
        %v962 = vunpack.c.0.s8 %v961
        %v963 = vlaneseq
        %v964 = vshrl.u32 %v963, 7
        %v965 = vsub.s32 %v962, %v964
        %v966 = vrot.slane %v957, %v965
        %v968 = vunpack.c.l.s4 1966171168
        %v969 = vunpack.c.0.s8 %v968
        %v970 = vlaneseq
        %v971 = vshrl.u32 %v970, 7
        %v972 = vsub.s32 %v969, %v971
        %v973 = vrot.slane %v959, %v972
        %v974 = vcombine.high %v966, %v966
        %v975 = vcombine.high %v973, %v973
        %v977 = vunpack.c.l.s4 1966171168
        %v978 = vunpack.c.0.s8 %v977
        %v979 = vlaneseq
        %v980 = vshrl.u32 %v979, 7
        %v981 = vsub.s32 %v978, %v980
        %v982 = vrot.slane %v966, %v981
        %v984 = vunpack.c.l.s4 1966171168
        %v985 = vunpack.c.0.s8 %v984
        %v986 = vlaneseq
        %v987 = vshrl.u32 %v986, 7
        %v988 = vsub.s32 %v985, %v987
        %v989 = vrot.slane %v973, %v988
        %v991 = vunpack.c.l.s4 1966171168
        %v992 = vunpack.c.0.s8 %v991
        %v993 = vlaneseq
        %v994 = vshrl.u32 %v993, 7
        %v995 = vsub.s32 %v992, %v994
        %v996 = vrot.slane %v974, %v995
        %v998 = vunpack.c.l.s4 1966171168
        %v999 = vunpack.c.0.s8 %v998
        %v1000 = vlaneseq
        %v1001 = vshrl.u32 %v1000, 7
        %v1002 = vsub.s32 %v999, %v1001
        %v1003 = vrot.slane %v975, %v1002
        %v1004 = vcombine.high %v982, %v982
        %v1005 = vcombine.high %v989, %v989
        %v1006 = vcombine.high %v996, %v996
        %v1007 = vcombine.high %v1003, %v1003
        %v1008 = vlaneseq
        %v1009 = vshrl.u32 %v1008, 7
        %v1010 = vsub.s32 0, %v1009
        %v1011 = vrot.slane %v982, %v1010
        %v1012 = vlaneseq
        %v1013 = vshrl.u32 %v1012, 7
        %v1014 = vsub.s32 0, %v1013
        %v1015 = vrot.slane %v996, %v1014
        %v1016 = vlaneseq
        %v1017 = vshrl.u32 %v1016, 7
        %v1018 = vsub.s32 0, %v1017
        %v1019 = vrot.slane %v1004, %v1018
        %v1020 = vlaneseq
        %v1021 = vshrl.u32 %v1020, 7
        %v1022 = vsub.s32 0, %v1021
        %v1023 = vrot.slane %v1006, %v1022
        %v1024 = vlaneseq
        %v1025 = vshrl.u32 %v1024, 7
        %v1026 = vsub.s32 0, %v1025
        %v1027 = vrot.slane %v989, %v1026
        %v1028 = vlaneseq
        %v1029 = vshrl.u32 %v1028, 7
        %v1030 = vsub.s32 0, %v1029
        %v1031 = vrot.slane %v1003, %v1030
        %v1032 = vlaneseq
        %v1033 = vshrl.u32 %v1032, 7
        %v1034 = vsub.s32 0, %v1033
        %v1035 = vrot.slane %v1005, %v1034
        %v1036 = vlaneseq
        %v1037 = vshrl.u32 %v1036, 7
        %v1038 = vsub.s32 0, %v1037
        %v1039 = vrot.slane %v1007, %v1038
        %v1048 = vmul.f32 %v283, %v1011
        %v1049 = vmul.f32 %v284, %v1011
        %v1050 = vmul.f32 %v285, %v1011
        %v1051 = vmul.f32 %v286, %v1011
        %v1052 = vmul.f32 %v287, %v1015
        %v1053 = vmul.f32 %v288, %v1015
        %v1054 = vmul.f32 %v289, %v1015
        %v1055 = vmul.f32 %v290, %v1015
        %v1056 = vmul.f32 %v291, %v1019
        %v1057 = vmul.f32 %v292, %v1019
        %v1058 = vmul.f32 %v293, %v1019
        %v1059 = vmul.f32 %v294, %v1019
        %v1060 = vmul.f32 %v295, %v1023
        %v1061 = vmul.f32 %v296, %v1023
        %v1062 = vmul.f32 %v297, %v1023
        %v1063 = vmul.f32 %v298, %v1023
        %v1064 = vmul.f32 %v299, %v1027
        %v1065 = vmul.f32 %v300, %v1027
        %v1066 = vmul.f32 %v301, %v1027
        %v1067 = vmul.f32 %v302, %v1027
        %v1068 = vmul.f32 %v303, %v1031
        %v1069 = vmul.f32 %v304, %v1031
        %v1070 = vmul.f32 %v305, %v1031
        %v1071 = vmul.f32 %v306, %v1031
        %v1072 = vmul.f32 %v307, %v1035
        %v1073 = vmul.f32 %v308, %v1035
        %v1074 = vmul.f32 %v309, %v1035
        %v1075 = vmul.f32 %v310, %v1035
        %v1076 = vmul.f32 %v311, %v1039
        %v1077 = vmul.f32 %v312, %v1039
        %v1078 = vmul.f32 %v313, %v1039
        %v1079 = vmul.f32 %v314, %v1039
        %1080 = vadd.xlane.f32.xlu0 %v1048
        %v1081 = vpop.xlane.xlu0 %1080
        %1082 = vadd.xlane.f32.xlu0 %v1049
        %v1083 = vpop.xlane.xlu0 %1082
        %1084 = vadd.xlane.f32.xlu0 %v1050
        %v1085 = vpop.xlane.xlu0 %1084
        %1086 = vadd.xlane.f32.xlu0 %v1051
        %v1087 = vpop.xlane.xlu0 %1086
        %1088 = vadd.xlane.f32.xlu0 %v1052
        %v1089 = vpop.xlane.xlu0 %1088
        %1090 = vadd.xlane.f32.xlu0 %v1053
        %v1091 = vpop.xlane.xlu0 %1090
        %1092 = vadd.xlane.f32.xlu0 %v1054
        %v1093 = vpop.xlane.xlu0 %1092
        %1094 = vadd.xlane.f32.xlu0 %v1055
        %v1095 = vpop.xlane.xlu0 %1094
        %1096 = vadd.xlane.f32.xlu0 %v1056
        %v1097 = vpop.xlane.xlu0 %1096
        %1098 = vadd.xlane.f32.xlu0 %v1057
        %v1099 = vpop.xlane.xlu0 %1098
        %1100 = vadd.xlane.f32.xlu0 %v1058
        %v1101 = vpop.xlane.xlu0 %1100
        %1102 = vadd.xlane.f32.xlu0 %v1059
        %v1103 = vpop.xlane.xlu0 %1102
        %1104 = vadd.xlane.f32.xlu0 %v1060
        %v1105 = vpop.xlane.xlu0 %1104
        %1106 = vadd.xlane.f32.xlu0 %v1061
        %v1107 = vpop.xlane.xlu0 %1106
        %1108 = vadd.xlane.f32.xlu0 %v1062
        %v1109 = vpop.xlane.xlu0 %1108
        %1110 = vadd.xlane.f32.xlu0 %v1063
        %v1111 = vpop.xlane.xlu0 %1110
        %1112 = vadd.xlane.f32.xlu0 %v1064
        %v1113 = vpop.xlane.xlu0 %1112
        %1114 = vadd.xlane.f32.xlu0 %v1065
        %v1115 = vpop.xlane.xlu0 %1114
        %1116 = vadd.xlane.f32.xlu0 %v1066
        %v1117 = vpop.xlane.xlu0 %1116
        %1118 = vadd.xlane.f32.xlu0 %v1067
        %v1119 = vpop.xlane.xlu0 %1118
        %1120 = vadd.xlane.f32.xlu0 %v1068
        %v1121 = vpop.xlane.xlu0 %1120
        %1122 = vadd.xlane.f32.xlu0 %v1069
        %v1123 = vpop.xlane.xlu0 %1122
        %1124 = vadd.xlane.f32.xlu0 %v1070
        %v1125 = vpop.xlane.xlu0 %1124
        %1126 = vadd.xlane.f32.xlu0 %v1071
        %v1127 = vpop.xlane.xlu0 %1126
        %1128 = vadd.xlane.f32.xlu0 %v1072
        %v1129 = vpop.xlane.xlu0 %1128
        %1130 = vadd.xlane.f32.xlu0 %v1073
        %v1131 = vpop.xlane.xlu0 %1130
        %1132 = vadd.xlane.f32.xlu0 %v1074
        %v1133 = vpop.xlane.xlu0 %1132
        %1134 = vadd.xlane.f32.xlu0 %v1075
        %v1135 = vpop.xlane.xlu0 %1134
        %1136 = vadd.xlane.f32.xlu0 %v1076
        %v1137 = vpop.xlane.xlu0 %1136
        %1138 = vadd.xlane.f32.xlu0 %v1077
        %v1139 = vpop.xlane.xlu0 %1138
        %1140 = vadd.xlane.f32.xlu0 %v1078
        %v1141 = vpop.xlane.xlu0 %1140
        %1142 = vadd.xlane.f32.xlu0 %v1079
        %v1143 = vpop.xlane.xlu0 %1142
        %v1176 = vlaneseq
        %v1177 = vshrl.u32 %v1176, 7
        %v1178 = vsub.s32 %v317, %v1177
        %v1179 = vrot.slane %v1081, %v1178
        %v1180 = vadd.s32 %v317, 4294967288
        %v1181 = vlaneseq
        %v1182 = vshrl.u32 %v1181, 7
        %v1183 = vsub.s32 %v1180, %v1182
        %v1184 = vrot.slane %v1083, %v1183
        %vm1185 = vcmask 130112
        %v1186 = vsel %vm1185, %v1184, %v1179
        %v1187 = vadd.s32 %v317, 4294967280
        %v1188 = vlaneseq
        %v1189 = vshrl.u32 %v1188, 7
        %v1190 = vsub.s32 %v1187, %v1189
        %v1191 = vrot.slane %v1085, %v1190
        %vm1192 = vcmask 195712
        %v1193 = vsel %vm1192, %v1191, %v1186
        %v1194 = vadd.s32 %v317, 4294967272
        %v1195 = vlaneseq
        %v1196 = vshrl.u32 %v1195, 7
        %v1197 = vsub.s32 %v1194, %v1196
        %v1198 = vrot.slane %v1087, %v1197
        %vm1199 = vcmask 261312
        %v1200 = vsel %vm1199, %v1198, %v1193
        %v1201 = vlaneseq
        %v1202 = vshrl.u32 %v1201, 7
        %v1203 = vsub.s32 %v317, %v1202
        %v1204 = vrot.slane %v1089, %v1203
        %v1205 = vlaneseq
        %v1206 = vshrl.u32 %v1205, 7
        %v1207 = vsub.s32 %v1180, %v1206
        %v1208 = vrot.slane %v1091, %v1207
        %v1209 = vsel %vm1185, %v1208, %v1204
        %v1210 = vlaneseq
        %v1211 = vshrl.u32 %v1210, 7
        %v1212 = vsub.s32 %v1187, %v1211
        %v1213 = vrot.slane %v1093, %v1212
        %v1214 = vsel %vm1192, %v1213, %v1209
        %v1215 = vlaneseq
        %v1216 = vshrl.u32 %v1215, 7
        %v1217 = vsub.s32 %v1194, %v1216
        %v1218 = vrot.slane %v1095, %v1217
        %v1219 = vsel %vm1199, %v1218, %v1214
        %v1220 = vlaneseq
        %v1221 = vshrl.u32 %v1220, 7
        %v1222 = vsub.s32 %v317, %v1221
        %v1223 = vrot.slane %v1097, %v1222
        %v1224 = vlaneseq
        %v1225 = vshrl.u32 %v1224, 7
        %v1226 = vsub.s32 %v1180, %v1225
        %v1227 = vrot.slane %v1099, %v1226
        %v1228 = vsel %vm1185, %v1227, %v1223
        %v1229 = vlaneseq
        %v1230 = vshrl.u32 %v1229, 7
        %v1231 = vsub.s32 %v1187, %v1230
        %v1232 = vrot.slane %v1101, %v1231
        %v1233 = vsel %vm1192, %v1232, %v1228
        %v1234 = vlaneseq
        %v1235 = vshrl.u32 %v1234, 7
        %v1236 = vsub.s32 %v1194, %v1235
        %v1237 = vrot.slane %v1103, %v1236
        %v1238 = vsel %vm1199, %v1237, %v1233
        %v1239 = vlaneseq
        %v1240 = vshrl.u32 %v1239, 7
        %v1241 = vsub.s32 %v317, %v1240
        %v1242 = vrot.slane %v1105, %v1241
        %v1243 = vlaneseq
        %v1244 = vshrl.u32 %v1243, 7
        %v1245 = vsub.s32 %v1180, %v1244
        %v1246 = vrot.slane %v1107, %v1245
        %v1247 = vsel %vm1185, %v1246, %v1242
        %v1248 = vlaneseq
        %v1249 = vshrl.u32 %v1248, 7
        %v1250 = vsub.s32 %v1187, %v1249
        %v1251 = vrot.slane %v1109, %v1250
        %v1252 = vsel %vm1192, %v1251, %v1247
        %v1253 = vlaneseq
        %v1254 = vshrl.u32 %v1253, 7
        %v1255 = vsub.s32 %v1194, %v1254
        %v1256 = vrot.slane %v1111, %v1255
        %v1257 = vsel %vm1199, %v1256, %v1252
        %v1258 = vlaneseq
        %v1259 = vshrl.u32 %v1258, 7
        %v1260 = vsub.s32 %v317, %v1259
        %v1261 = vrot.slane %v1113, %v1260
        %v1262 = vlaneseq
        %v1263 = vshrl.u32 %v1262, 7
        %v1264 = vsub.s32 %v1180, %v1263
        %v1265 = vrot.slane %v1115, %v1264
        %v1266 = vsel %vm1185, %v1265, %v1261
        %v1267 = vlaneseq
        %v1268 = vshrl.u32 %v1267, 7
        %v1269 = vsub.s32 %v1187, %v1268
        %v1270 = vrot.slane %v1117, %v1269
        %v1271 = vsel %vm1192, %v1270, %v1266
        %v1272 = vlaneseq
        %v1273 = vshrl.u32 %v1272, 7
        %v1274 = vsub.s32 %v1194, %v1273
        %v1275 = vrot.slane %v1119, %v1274
        %v1276 = vsel %vm1199, %v1275, %v1271
        %v1277 = vlaneseq
        %v1278 = vshrl.u32 %v1277, 7
        %v1279 = vsub.s32 %v317, %v1278
        %v1280 = vrot.slane %v1121, %v1279
        %v1281 = vlaneseq
        %v1282 = vshrl.u32 %v1281, 7
        %v1283 = vsub.s32 %v1180, %v1282
        %v1284 = vrot.slane %v1123, %v1283
        %v1285 = vsel %vm1185, %v1284, %v1280
        %v1286 = vlaneseq
        %v1287 = vshrl.u32 %v1286, 7
        %v1288 = vsub.s32 %v1187, %v1287
        %v1289 = vrot.slane %v1125, %v1288
        %v1290 = vsel %vm1192, %v1289, %v1285
        %v1291 = vlaneseq
        %v1292 = vshrl.u32 %v1291, 7
        %v1293 = vsub.s32 %v1194, %v1292
        %v1294 = vrot.slane %v1127, %v1293
        %v1295 = vsel %vm1199, %v1294, %v1290
        %v1296 = vlaneseq
        %v1297 = vshrl.u32 %v1296, 7
        %v1298 = vsub.s32 %v317, %v1297
        %v1299 = vrot.slane %v1129, %v1298
        %v1300 = vlaneseq
        %v1301 = vshrl.u32 %v1300, 7
        %v1302 = vsub.s32 %v1180, %v1301
        %v1303 = vrot.slane %v1131, %v1302
        %v1304 = vsel %vm1185, %v1303, %v1299
        %v1305 = vlaneseq
        %v1306 = vshrl.u32 %v1305, 7
        %v1307 = vsub.s32 %v1187, %v1306
        %v1308 = vrot.slane %v1133, %v1307
        %v1309 = vsel %vm1192, %v1308, %v1304
        %v1310 = vlaneseq
        %v1311 = vshrl.u32 %v1310, 7
        %v1312 = vsub.s32 %v1194, %v1311
        %v1313 = vrot.slane %v1135, %v1312
        %v1314 = vsel %vm1199, %v1313, %v1309
        %v1315 = vlaneseq
        %v1316 = vshrl.u32 %v1315, 7
        %v1317 = vsub.s32 %v317, %v1316
        %v1318 = vrot.slane %v1137, %v1317
        %v1319 = vlaneseq
        %v1320 = vshrl.u32 %v1319, 7
        %v1321 = vsub.s32 %v1180, %v1320
        %v1322 = vrot.slane %v1139, %v1321
        %v1323 = vsel %vm1185, %v1322, %v1318
        %v1324 = vlaneseq
        %v1325 = vshrl.u32 %v1324, 7
        %v1326 = vsub.s32 %v1187, %v1325
        %v1327 = vrot.slane %v1141, %v1326
        %v1328 = vsel %vm1192, %v1327, %v1323
        %v1329 = vlaneseq
        %v1330 = vshrl.u32 %v1329, 7
        %v1331 = vsub.s32 %v1194, %v1330
        %v1332 = vrot.slane %v1143, %v1331
        %v1333 = vsel %vm1199, %v1332, %v1328
        %v1334 = vsel %vm710, %v1219, %v1200
        %v1335 = vsel %vm713, %v1238, %v1334
        %v1336 = vsel %vm716, %v1257, %v1335
        %v1337 = vsel %vm719, %v1276, %v1336
        %v1338 = vsel %vm722, %v1295, %v1337
        %v1339 = vsel %vm725, %v1314, %v1338
        %v1340 = vsel %vm728, %v1333, %v1339
        %vm1341 = vcmask 261120
        %v1342 = vsel %vm1341, %v1340, 0
        %1344 = vmatprep.subr.mxu0 0.0
        %1345 = vmatpush1.msra.mxu0 %v333
        %1346 = vmatprep.subr.mxu0 0.0
        %1347 = vmatpush1.msra.mxu0 %v334
        %1348 = vmatprep.subr.mxu0 0.0
        %1349 = vmatpush1.msra.mxu0 %v335
        %1350 = vmatprep.subr.mxu0 0.0
        %1351 = vmatpush1.msra.mxu0 %v336
        %1352 = vmatprep.subr.mxu0 0.0
        %1353 = vmatpush1.msra.mxu0 0.0
        %1354 = vmatprep.subr.mxu0 0.0
        %1355 = vmatpush1.msra.mxu0 0.0
        %1356 = vmatprep.subr.mxu0 0.0
        %1357 = vmatpush1.msra.mxu0 0.0
        %1358 = vmatprep.subr.mxu0 0.0
        %1359 = vmatpush1.msra.mxu0 0.0
        %1360 = vmatprep.subr.mxu0 0.0
        %1361 = vmatpush1.msra.mxu0 0.0
        %1362 = vmatprep.subr.mxu0 0.0
        %1363 = vmatpush1.msra.mxu0 0.0
        %1364 = vmatprep.subr.mxu0 0.0
        %1365 = vmatpush1.msra.mxu0 0.0
        %1366 = vmatprep.subr.mxu0 0.0
        %1367 = vmatpush1.msra.mxu0 0.0
        %1368 = vmatprep.subr.mxu0 0.0
        %1369 = vmatpush1.msra.mxu0 0.0
        %1370 = vmatprep.subr.mxu0 0.0
        %1371 = vmatpush1.msra.mxu0 0.0
        %1372 = vmatprep.subr.mxu0 0.0
        %1373 = vmatpush1.msra.mxu0 0.0
        %1374 = vmatprep.subr.mxu0 0.0
        %1375 = vmatpush1.msra.mxu0 0.0
        %1376 = vmatprep.subr.mxu0 0.0
        %1377 = vmatpush1.msra.mxu0 0.0
        %1378 = vmatprep.subr.mxu0 0.0
        %1379 = vmatpush1.msra.mxu0 0.0
        %1380 = vmatprep.subr.mxu0 0.0
        %1381 = vmatpush1.msra.mxu0 0.0
        %1382 = vmatprep.subr.mxu0 0.0
        %1383 = vmatpush1.msra.mxu0 0.0
        %1384 = vmatprep.subr.mxu0 0.0
        %1385 = vmatpush1.msra.mxu0 0.0
        %1386 = vmatprep.subr.mxu0 0.0
        %1387 = vmatpush1.msra.mxu0 0.0
        %1388 = vmatprep.subr.mxu0 0.0
        %1389 = vmatpush1.msra.mxu0 0.0
        %1390 = vmatprep.subr.mxu0 0.0
        %1391 = vmatpush1.msra.mxu0 0.0
        %1392 = vmatprep.subr.mxu0 0.0
        %1393 = vmatpush1.msra.mxu0 0.0
        %1394 = vmatprep.subr.mxu0 0.0
        %1395 = vmatpush1.msra.mxu0 0.0
        %1396 = vmatprep.subr.mxu0 0.0
        %1397 = vmatpush1.msra.mxu0 0.0
        %1398 = vmatprep.subr.mxu0 0.0
        %1399 = vmatpush1.msra.mxu0 0.0
        %1400 = vmatprep.subr.mxu0 0.0
        %1401 = vmatpush1.msra.mxu0 0.0
        %1402 = vmatprep.subr.mxu0 0.0
        %1403 = vmatpush1.msra.mxu0 0.0
        %1404 = vmatprep.subr.mxu0 0.0
        %1405 = vmatpush1.msra.mxu0 0.0
        %1406 = vmatprep.subr.mxu0 0.0
        %1407 = vmatpush1.msra.mxu0 0.0
        %1408 = vmatprep.mubr.f32.mxu0 0.0
        %1409 = vmatmul.mubr.f32.gmra.mrb[0].mxu0 %v1342
        %v1410 = vpop.f32.mrb[0].mxu0
        %v1411 = vadd.f32 0.0, %v1410
        %v1412 = vpop.f32.mrb[0].mxu0
        %1413 = vdwg.mxu0
        %v1414 = vstv %s339
        %v1415 = vmul.f32 %v1411, %v1414
        %v1424 = vrot.slane %v461, 7
        %v1425 = vsel %vm710, %v1424, %v460
        %v1426 = vrot.slane %v462, 6
        %v1427 = vsel %vm713, %v1426, %v1425
        %v1428 = vrot.slane %v463, 5
        %v1429 = vsel %vm716, %v1428, %v1427
        %v1430 = vrot.slane %v464, 4
        %v1431 = vsel %vm719, %v1430, %v1429
        %v1432 = vrot.slane %v465, 3
        %v1433 = vsel %vm722, %v1432, %v1431
        %v1434 = vrot.slane %v466, 2
        %v1435 = vsel %vm725, %v1434, %v1433
        %v1436 = vrot.slane %v467, 1
        %v1437 = vsel %vm728, %v1436, %v1435
        %1439 = vst [vmem:[%s281] sm:$0xff] %v1437
        %s1440 = scalar_lea.vmem %s281, 8 [#allocation10]
        %1441 = vst [vmem:[%s1440] sm:$0xff] %v729
        %s1442 = scalar_lea.vmem %s281, 16 [#allocation10]
        %1443 = vst [vmem:[%s1442] sm:$0xff] %v742
        %v1452 = vrot.slane %v907, 7
        %v1453 = vsel %vm710, %v1452, %v906
        %v1454 = vrot.slane %v908, 6
        %v1455 = vsel %vm713, %v1454, %v1453
        %v1456 = vrot.slane %v909, 5
        %v1457 = vsel %vm716, %v1456, %v1455
        %v1458 = vrot.slane %v910, 4
        %v1459 = vsel %vm719, %v1458, %v1457
        %v1460 = vrot.slane %v911, 3
        %v1461 = vsel %vm722, %v1460, %v1459
        %v1462 = vrot.slane %v912, 2
        %v1463 = vsel %vm725, %v1462, %v1461
        %v1464 = vrot.slane %v913, 1
        %v1465 = vsel %vm728, %v1464, %v1463
        %s1467 = scalar_lea.vmem %s281, 24 [#allocation10]
        %1468 = vst [vmem:[%s1467] sm:$0xff] %v1465
        %s1469 = scalar_lea.vmem %s281, 32 [#allocation10]
        %1470 = vst [vmem:[%s1469] sm:$0xff] %v944
        %s1471 = scalar_lea.vmem %s281, 40 [#allocation10]
        %1472 = vst [vmem:[%s1471] sm:$0xff] %v957
        %s1473 = scalar_lea.vmem %s281, 48 [#allocation10]
        %1474 = vst [vmem:[%s1473] sm:$0xff] %v1415
        %s1475 = scalar_lea.vmem %s281, 56 [#allocation10]
        %1476 = vst [vmem:[%s1475] sm:$0xff] 0.0
        %s1477 = sand.u32 %s127, 1
        %s1478 = scalar_lea.sflag [#allocation4], %s1477
        %s1479 = sand.u32 %s127, 1
        %s1480 = smul.addr %s1479, 64
        %s1481 = scalar_lea.vmem [#allocation10], %s1480
        // Predicated region
        $region53: #{_run_fused_program.1} parent=35 // pred_check
          %p1482 = pneg %p137
        $region54: #{_run_fused_program.1} parent=35 // pred_check_branch
          %1484 = sbr.rel (%p1482) target = $region56
        $region55: #{_run_fused_program.1} parent=35 // pred_region
          %s1486 = ssub.s32 1024, 1024
          %1487 = vsyncadd %s1478, %s1486
          %s1488 = smul.addr %s25, 128
          %s1489 = scalar_lea.hbm %s4, %s1488
          %s1490 = sshll.u32 %s1481, 4
          %s1491 = int_to_ptr.vmem [resolvable:$true] %s1490
          %1496 = dma.vmem_to_hbm [thread:$0]  %s1491, 1024, %s1489, %s1478, 128, 256, 8
        $region56: #{_run_fused_program.1} parent=35 // pred_fallthru
          _
      $region36: #{_run_fused_program.1} parent=5 // pred_fallthru
        _
      %p1497 = scmp.le.s32.totalorder 2, %s20
      // Predicated region
      $region57: #{_run_fused_program.1} parent=5 // pred_check
        %p1498 = pneg %p1497
      $region58: #{_run_fused_program.1} parent=5 // pred_check_branch
        %1500 = sbr.rel (%p1498) target = $region60
      $region59: #{_run_fused_program.1} parent=5 // pred_region
        %s1501 = ssub.s32 %s20, 2
        // Predicated region
        $region61: #{_run_fused_program.1} parent=59 // pred_check
          %p1502 = pneg %p143
        $region62: #{_run_fused_program.1} parent=59 // pred_check_branch
          %1504 = sbr.rel (%p1502) target = $region64
        $region63: #{_run_fused_program.1} parent=59 // pred_region
          %s1505 = sand.u32 %s128, 1
          %s1506 = scalar_lea.sflag [#allocation4], %s1505
          %s1507 = sand.u32 %s128, 1
          %s1508 = smul.addr %s1507, 64
          %s1509 = scalar_lea.vmem [#allocation10], %s1508
          %1510 = dma.done %s1506, 1024
        $region64: #{_run_fused_program.1} parent=59 // pred_fallthru
          _
      $region60: #{_run_fused_program.1} parent=5 // pred_fallthru
        _
    $region6: #{_run_fused_program.1} parent=1 // loop_footer
      %s24 = sadd.s32 1, %s20
    $region7: #{_run_fused_program.1} parent=1 // loop_footer_branch
      %19 = sbr.rel target = $region3
    $region8: #{_run_fused_program.1} parent=1 // loop_exit
      _
    %1511 = vsyncpa [#allocation3], 1
    %s1512 = scalar_lea.sflag [#allocation3], 1
    %1513 = vsyncpa %s1512, 1
    %1514 = vsyncpa [#allocation8], 1
    %s1515 = scalar_lea.sflag [#allocation8], 1
    %1516 = vsyncpa %s1515, 1
    %1517 = vsyncpa [#allocation4], 1
    %s1518 = scalar_lea.sflag [#allocation4], 1
    %1519 = vsyncpa %s1518, 1
    %1520 = vsyncpa [#allocation5], 1
    %s1521 = scalar_lea.sflag [#allocation5], 1
    %1522 = vsyncpa %s1521, 1

</llo_original>
